<compile_context>
chip_gen: v7x
topology: tpu7x:2x2x1
jax: 0.10.0
libtpu: 0.0.40
codegen_flags: <defaults>
</compile_context>

<pallas_src>
import jax
import jax.numpy as jnp
from jax.experimental import pallas as pl
from jax.experimental.pallas import tpu as pltpu

HID_DIM = 32
NUM_LAYERS = 2


# ----------------------------- kernel helpers -----------------------------

def _lstm_gates(gates, c_prev):
    """gates: (B, 4H) f32 (one vreg when 4H == 128), c_prev: (B, H)."""
    H = c_prev.shape[-1]
    # Whole-vreg sigmoid / tanh (2 EUP launches total), then cheap lane slices.
    sig = jax.nn.sigmoid(gates)
    tnh = jnp.tanh(gates)
    i_g = sig[:, 0 * H:1 * H]
    f_g = sig[:, 1 * H:2 * H]
    g_g = tnh[:, 2 * H:3 * H]
    o_g = sig[:, 3 * H:4 * H]
    c_new = f_g * c_prev + i_g * g_g
    h_new = o_g * jnp.tanh(c_new)
    return h_new, c_new


def _make_encoder_kernel(num_layers):
    L = num_layers

    def kernel(x_ref, *refs):
        wih = refs[0:L]
        whh = refs[L:2 * L]
        bia = refs[2 * L:3 * L]
        h_out_ref, c_out_ref = refs[3 * L], refs[3 * L + 1]
        h_sc, c_sc = refs[3 * L + 2], refs[3 * L + 3]

        t = pl.program_id(0)

        @pl.when(t == 0)
        def _():
            h_sc[...] = jnp.zeros_like(h_sc)
            c_sc[...] = jnp.zeros_like(c_sc)

        x = x_ref[0]                                        # (B, E)
        for l in range(L):
            gates = (
                jnp.dot(x, wih[l][...], preferred_element_type=jnp.float32)
                + jnp.dot(h_sc[l], whh[l][...], preferred_element_type=jnp.float32)
                + bia[l][...]
            )
            h_new, c_new = _lstm_gates(gates, c_sc[l])
            h_sc[l] = h_new
            c_sc[l] = c_new
            x = h_new

        @pl.when(t == pl.num_programs(0) - 1)
        def _():
            h_out_ref[...] = h_sc[...]
            c_out_ref[...] = c_sc[...]

    return kernel


def _make_decoder_kernel(num_layers):
    L = num_layers

    def kernel(x0_ref, h0_ref, c0_ref, *refs):
        wih = refs[0:L]
        whh = refs[L:2 * L]
        bia = refs[2 * L:3 * L]
        emb_ref, ow_ref, ob_ref = refs[3 * L], refs[3 * L + 1], refs[3 * L + 2]
        out_ref = refs[3 * L + 3]
        h_sc, c_sc, x_sc = refs[3 * L + 4], refs[3 * L + 5], refs[3 * L + 6]

        t = pl.program_id(0)

        @pl.when(t == 0)
        def _():
            h_sc[...] = h0_ref[...]
            c_sc[...] = c0_ref[...]
            x_sc[...] = x0_ref[...]

        x = x_sc[...]                                       # (B, E)
        for l in range(L):
            gates = (
                jnp.dot(x, wih[l][...], preferred_element_type=jnp.float32)
                + jnp.dot(h_sc[l], whh[l][...], preferred_element_type=jnp.float32)
                + bia[l][...]
            )
            h_new, c_new = _lstm_gates(gates, c_sc[l])
            h_sc[l] = h_new
            c_sc[l] = c_new
            x = h_new

        # Output projection, lane-dense write for this timestep.
        logits = (jnp.dot(x, ow_ref[...], preferred_element_type=jnp.float32)
                  + ob_ref[...])                            # (B, V)
        out_ref[0] = logits

        # Greedy feedback fully in-kernel: argmax over V (lane reduce, first
        # index on ties like torch/jnp) -> embedding lookup via one-hot matmul.
        B, V = logits.shape
        m = jnp.max(logits, axis=-1, keepdims=True)         # (B, 1)
        lane_f = jax.lax.broadcasted_iota(jnp.int32, (B, V), 1).astype(jnp.float32)
        idx = jnp.min(jnp.where(logits == m, lane_f, jnp.float32(V)),
                      axis=-1, keepdims=True)               # (B, 1)
        onehot = (lane_f == idx).astype(jnp.float32)        # (B, V)
        x_sc[...] = jnp.dot(onehot, emb_ref[...],
                            preferred_element_type=jnp.float32)  # (B, E)

    return kernel


def _const_spec(arr):
    nd = arr.ndim
    return pl.BlockSpec(arr.shape, lambda t, _n=nd: (0,) * _n)


# ----------------------------- pallas_call wrappers -----------------------------

def encode(enc_emb, layers):
    """enc_emb: (S1, B, E) -> final (h, c), each (L, B, H)."""
    S1, B, E = enc_emb.shape
    L = len(layers)
    H = layers[0][1].shape[0]
    wihs = [p[0] for p in layers]
    whhs = [p[1] for p in layers]
    bias = [p[2] for p in layers]

    in_specs = ([pl.BlockSpec((1, B, E), lambda t: (t, 0, 0))]
                + [_const_spec(w) for w in (*wihs, *whhs, *bias)])
    out_specs = (pl.BlockSpec((L, B, H), lambda t: (0, 0, 0)),
                 pl.BlockSpec((L, B, H), lambda t: (0, 0, 0)))

    h, c = pl.pallas_call(
        _make_encoder_kernel(L),
        grid=(S1,),
        in_specs=in_specs,
        out_specs=out_specs,
        out_shape=(jax.ShapeDtypeStruct((L, B, H), jnp.float32),
                   jax.ShapeDtypeStruct((L, B, H), jnp.float32)),
        scratch_shapes=[pltpu.VMEM((L, B, H), jnp.float32),
                        pltpu.VMEM((L, B, H), jnp.float32)],
        compiler_params=pltpu.CompilerParams(
            dimension_semantics=("arbitrary",)),
    )(enc_emb, *wihs, *whhs, *bias)
    return h, c


def decode(x0_emb, h0, c0, layers, emb, out_w, out_b, n_steps):
    """Greedy decode n_steps tokens -> logits (n_steps, B, V)."""
    B, E = x0_emb.shape
    L, _, H = h0.shape
    V = out_w.shape[1]
    wihs = [p[0] for p in layers]
    whhs = [p[1] for p in layers]
    bias = [p[2] for p in layers]

    in_specs = ([_const_spec(x0_emb), _const_spec(h0), _const_spec(c0)]
                + [_const_spec(w) for w in (*wihs, *whhs, *bias)]
                + [_const_spec(emb), _const_spec(out_w), _const_spec(out_b)])
    out_spec = pl.BlockSpec((1, B, V), lambda t: (t, 0, 0))

    y = pl.pallas_call(
        _make_decoder_kernel(L),
        grid=(n_steps,),
        in_specs=in_specs,
        out_specs=out_spec,
        out_shape=jax.ShapeDtypeStruct((n_steps, B, V), jnp.float32),
        scratch_shapes=[pltpu.VMEM((L, B, H), jnp.float32),
                        pltpu.VMEM((L, B, H), jnp.float32),
                        pltpu.VMEM((B, E), jnp.float32)],
        compiler_params=pltpu.CompilerParams(
            dimension_semantics=("arbitrary",)),
    )(x0_emb, h0, c0, *wihs, *whhs, *bias, emb, out_w, out_b)
    return y


# ----------------------------- model (single jit) -----------------------------

def init_params(key, vocab_size, embedding_dim, h_dim, num_layers):
    """Deterministic parameter init mimicking PyTorch's uniform(-k, k)."""
    def uniform(key, shape, k):
        return jax.random.uniform(key, shape, jnp.float32, minval=-k, maxval=k)

    keys = jax.random.split(key, 64)
    ki = iter(range(64))
    k = 1.0 / jnp.sqrt(h_dim)

    def make_lstm(prefix_in_dim):
        layers = []
        in_dim = prefix_in_dim
        for _ in range(num_layers):
            w_ih = uniform(keys[next(ki)], (in_dim, 4 * h_dim), k)   # (E/H, 4H)
            w_hh = uniform(keys[next(ki)], (h_dim, 4 * h_dim), k)    # (H, 4H)
            b = (uniform(keys[next(ki)], (1, 4 * h_dim), k)
                 + uniform(keys[next(ki)], (1, 4 * h_dim), k))       # b_ih + b_hh
            layers.append((w_ih, w_hh, b))
            in_dim = h_dim
        return layers

    params = {
        "enc_embedding": jax.random.normal(
            keys[next(ki)], (vocab_size, embedding_dim), jnp.float32),
        "enc_lstm": make_lstm(embedding_dim),
        "dec_embedding": jax.random.normal(
            keys[next(ki)], (vocab_size, embedding_dim), jnp.float32),
        "dec_lstm": make_lstm(embedding_dim),
        "out_w": uniform(keys[next(ki)], (h_dim, vocab_size), k),    # (H, V)
        "out_b": uniform(keys[next(ki)], (1, vocab_size), k),
    }
    return params


@jax.jit
def _forward(params, x_src, x_tgt):
    # --- encoder (one fused Pallas kernel over S_SRC timesteps) ---
    enc_emb = jnp.take(params["enc_embedding"], x_src, axis=0)       # (S1, B, E)
    h, c = encode(enc_emb, params["enc_lstm"])                       # (L, B, H)

    # --- greedy decoder (one fused Pallas kernel over S_TGT-1 timesteps) ---
    x0 = jnp.take(params["dec_embedding"], x_tgt[0], axis=0)         # (B, E)
    S2 = x_tgt.shape[0]
    y_hat = decode(x0, h, c, params["dec_lstm"], params["dec_embedding"],
                   params["out_w"], params["out_b"], n_steps=S2 - 1)
    return y_hat                                                     # (S2-1, B, V)


def seq2seq_forward(params, x_src, x_tgt, p_tf=0.0):
    # p_tf = 0 path only (always feed back argmax), matching the reference call.
    del p_tf
    return _forward(params, x_src, x_tgt)


# ----------------------------- main -----------------------------

if __name__ == "__main__":
    VOCAB = 128
    EMB = 32
    B = 8
    S_SRC = 8
    S_TGT = 6

    key = jax.random.PRNGKey(0)
    k_params, k_src, k_tgt = jax.random.split(key, 3)

    params = init_params(k_params, VOCAB, EMB, HID_DIM, NUM_LAYERS)
    x_src = jax.random.randint(k_src, (S_SRC, B), 0, VOCAB, dtype=jnp.int32)
    x_tgt = jax.random.randint(k_tgt, (S_TGT, B), 0, VOCAB, dtype=jnp.int32)

    y_hat = seq2seq_forward(params, x_src, x_tgt, p_tf=0.0)
    y_hat = jax.block_until_ready(y_hat)

    assert y_hat.shape == (S_TGT - 1, B, VOCAB), y_hat.shape
    assert y_hat.dtype == jnp.float32
    assert bool(jnp.all(jnp.isfinite(y_hat)))
    print("KERNEL_OK")
</pallas_src>

<mosaic_0001>
module attributes {stable_mosaic.version = 11 : i64} {
  func.func @kernel(%arg0: i32, %arg1: memref<1x8x32xf32, #tpu.memory_space<vmem>>, %arg2: memref<32x128xf32, #tpu.memory_space<vmem>>, %arg3: memref<32x128xf32, #tpu.memory_space<vmem>>, %arg4: memref<32x128xf32, #tpu.memory_space<vmem>>, %arg5: memref<32x128xf32, #tpu.memory_space<vmem>>, %arg6: memref<1x128xf32, #tpu.memory_space<vmem>>, %arg7: memref<1x128xf32, #tpu.memory_space<vmem>>, %arg8: memref<2x8x32xf32, #tpu.memory_space<vmem>>, %arg9: memref<2x8x32xf32, #tpu.memory_space<vmem>>, %arg10: memref<2x8x32xf32, #tpu.memory_space<vmem>>, %arg11: memref<2x8x32xf32, #tpu.memory_space<vmem>>) attributes {dimension_semantics = [#tpu.dimension_semantics<arbitrary>], iteration_bounds = array<i64: 8>, scalar_prefetch = 0 : i64, scratch_operands = 2 : i64, tpu.core_type = #tpu.core_type<tc>, window_params = [{transform_indices = @transform_0, window_bounds = array<i64: 1, 8, 32>}, {pipeline_mode = #tpu.pipeline_mode<synchronous>, transform_indices = @transform_1, window_bounds = array<i64: 32, 128>}, {pipeline_mode = #tpu.pipeline_mode<synchronous>, transform_indices = @transform_2, window_bounds = array<i64: 32, 128>}, {pipeline_mode = #tpu.pipeline_mode<synchronous>, transform_indices = @transform_3, window_bounds = array<i64: 32, 128>}, {pipeline_mode = #tpu.pipeline_mode<synchronous>, transform_indices = @transform_4, window_bounds = array<i64: 32, 128>}, {pipeline_mode = #tpu.pipeline_mode<synchronous>, transform_indices = @transform_5, window_bounds = array<i64: 1, 128>}, {pipeline_mode = #tpu.pipeline_mode<synchronous>, transform_indices = @transform_6, window_bounds = array<i64: 1, 128>}, {pipeline_mode = #tpu.pipeline_mode<synchronous>, transform_indices = @transform_7, window_bounds = array<i64: 2, 8, 32>}, {pipeline_mode = #tpu.pipeline_mode<synchronous>, transform_indices = @transform_8, window_bounds = array<i64: 2, 8, 32>}]} {
    %c0_i32 = arith.constant 0 : i32
    %0 = arith.cmpi eq, %arg0, %c0_i32 : i32
    %1 = arith.extui %0 : i1 to i32
    %c0_i32_0 = arith.constant 0 : i32
    %2 = arith.cmpi ne, %1, %c0_i32_0 : i32
    scf.if %2 {
      %cst_44 = arith.constant 0.000000e+00 : f32
      %74 = vector.broadcast %cst_44 : f32 to vector<2x8x32xf32>
      %c0_45 = arith.constant 0 : index
      %c0_46 = arith.constant 0 : index
      %c0_47 = arith.constant 0 : index
      %75 = vector.load %arg10[%c0_45, %c0_46, %c0_47] : memref<2x8x32xf32, #tpu.memory_space<vmem>>, vector<2x8x32xf32>
      tpu.vector_store %arg10[%c0_45, %c0_46, %c0_47], %74 {strides = array<i32>} : memref<2x8x32xf32, #tpu.memory_space<vmem>>, vector<2x8x32xf32>,
      %cst_48 = arith.constant 0.000000e+00 : f32
      %76 = vector.broadcast %cst_48 : f32 to vector<2x8x32xf32>
      %c0_49 = arith.constant 0 : index
      %c0_50 = arith.constant 0 : index
      %c0_51 = arith.constant 0 : index
      %77 = vector.load %arg11[%c0_49, %c0_50, %c0_51] : memref<2x8x32xf32, #tpu.memory_space<vmem>>, vector<2x8x32xf32>
      tpu.vector_store %arg11[%c0_49, %c0_50, %c0_51], %76 {strides = array<i32>} : memref<2x8x32xf32, #tpu.memory_space<vmem>>, vector<2x8x32xf32>,
    } else {
    }
    %c0 = arith.constant 0 : index
    %c0_1 = arith.constant 0 : index
    %c0_2 = arith.constant 0 : index
    %3 = vector.load %arg1[%c0, %c0_1, %c0_2] : memref<1x8x32xf32, #tpu.memory_space<vmem>>, vector<1x8x32xf32>
    %4 = vector.shape_cast %3 : vector<1x8x32xf32> to vector<8x32xf32>
    %c0_3 = arith.constant 0 : index
    %c0_4 = arith.constant 0 : index
    %5 = vector.load %arg2[%c0_3, %c0_4] : memref<32x128xf32, #tpu.memory_space<vmem>>, vector<32x128xf32>
    %cst = arith.constant dense<0.000000e+00> : vector<8x128xf32>
    %6 = tpu.matmul %4, %5, %cst {dimension_numbers = #tpu.dot_dimension_numbers<[1], [0], [0], [1], [0, 0, 1, 1], [], []>} : vector<8x32xf32>, vector<32x128xf32>, vector<8x128xf32> -> vector<8x128xf32>
    %c0_5 = arith.constant 0 : index
    %c0_6 = arith.constant 0 : index
    %c0_7 = arith.constant 0 : index
    %7 = vector.load %arg10[%c0_5, %c0_6, %c0_7] : memref<2x8x32xf32, #tpu.memory_space<vmem>>, vector<1x8x32xf32>
    %8 = vector.shape_cast %7 : vector<1x8x32xf32> to vector<8x32xf32>
    %c0_8 = arith.constant 0 : index
    %c0_9 = arith.constant 0 : index
    %9 = vector.load %arg4[%c0_8, %c0_9] : memref<32x128xf32, #tpu.memory_space<vmem>>, vector<32x128xf32>
    %cst_10 = arith.constant dense<0.000000e+00> : vector<8x128xf32>
    %10 = tpu.matmul %8, %9, %cst_10 {dimension_numbers = #tpu.dot_dimension_numbers<[1], [0], [0], [1], [0, 0, 1, 1], [], []>} : vector<8x32xf32>, vector<32x128xf32>, vector<8x128xf32> -> vector<8x128xf32>
    %11 = arith.addf %6, %10 : vector<8x128xf32>
    %c0_11 = arith.constant 0 : index
    %c0_12 = arith.constant 0 : index
    %12 = vector.load %arg6[%c0_11, %c0_12] : memref<1x128xf32, #tpu.memory_space<vmem>>, vector<1x128xf32>
    %13 = vector.broadcast %12 : vector<1x128xf32> to vector<8x128xf32>
    %14 = arith.addf %11, %13 : vector<8x128xf32>
    %c0_13 = arith.constant 0 : index
    %c0_14 = arith.constant 0 : index
    %c0_15 = arith.constant 0 : index
    %15 = vector.load %arg11[%c0_13, %c0_14, %c0_15] : memref<2x8x32xf32, #tpu.memory_space<vmem>>, vector<1x8x32xf32>
    %16 = vector.shape_cast %15 : vector<1x8x32xf32> to vector<8x32xf32>
    %17 = arith.negf %14 : vector<8x128xf32>
    %18 = math.exp %17 : vector<8x128xf32>
    %cst_16 = arith.constant 1.000000e+00 : f32
    %19 = vector.broadcast %cst_16 : f32 to vector<8x128xf32>
    %20 = arith.addf %19, %18 : vector<8x128xf32>
    %21 = arith.divf %19, %20 : vector<8x128xf32>
    %22 = math.tanh %14 : vector<8x128xf32>
    %23 = vector.extract_strided_slice %21 {offsets = [0, 0], sizes = [8, 32], strides = [1, 1]} : vector<8x128xf32> to vector<8x32xf32>
    %24 = vector.extract_strided_slice %21 {offsets = [0, 32], sizes = [8, 32], strides = [1, 1]} : vector<8x128xf32> to vector<8x32xf32>
    %25 = vector.extract_strided_slice %22 {offsets = [0, 64], sizes = [8, 32], strides = [1, 1]} : vector<8x128xf32> to vector<8x32xf32>
    %26 = vector.extract_strided_slice %21 {offsets = [0, 96], sizes = [8, 32], strides = [1, 1]} : vector<8x128xf32> to vector<8x32xf32>
    %27 = arith.mulf %24, %16 : vector<8x32xf32>
    %28 = arith.mulf %23, %25 : vector<8x32xf32>
    %29 = arith.addf %27, %28 : vector<8x32xf32>
    %30 = math.tanh %29 : vector<8x32xf32>
    %31 = arith.mulf %26, %30 : vector<8x32xf32>
    %c0_17 = arith.constant 0 : index
    %c0_18 = arith.constant 0 : index
    %c0_19 = arith.constant 0 : index
    %32 = vector.load %arg10[%c0_17, %c0_18, %c0_19] : memref<2x8x32xf32, #tpu.memory_space<vmem>>, vector<1x8x32xf32>
    %33 = vector.shape_cast %32 : vector<1x8x32xf32> to vector<8x32xf32>
    %34 = vector.shape_cast %31 : vector<8x32xf32> to vector<1x8x32xf32>
    tpu.vector_store %arg10[%c0_17, %c0_18, %c0_19], %34 {strides = array<i32>} : memref<2x8x32xf32, #tpu.memory_space<vmem>>, vector<1x8x32xf32>,
    %c0_20 = arith.constant 0 : index
    %c0_21 = arith.constant 0 : index
    %c0_22 = arith.constant 0 : index
    %35 = vector.load %arg11[%c0_20, %c0_21, %c0_22] : memref<2x8x32xf32, #tpu.memory_space<vmem>>, vector<1x8x32xf32>
    %36 = vector.shape_cast %35 : vector<1x8x32xf32> to vector<8x32xf32>
    %37 = vector.shape_cast %29 : vector<8x32xf32> to vector<1x8x32xf32>
    tpu.vector_store %arg11[%c0_20, %c0_21, %c0_22], %37 {strides = array<i32>} : memref<2x8x32xf32, #tpu.memory_space<vmem>>, vector<1x8x32xf32>,
    %c0_23 = arith.constant 0 : index
    %c0_24 = arith.constant 0 : index
    %38 = vector.load %arg3[%c0_23, %c0_24] : memref<32x128xf32, #tpu.memory_space<vmem>>, vector<32x128xf32>
    %cst_25 = arith.constant dense<0.000000e+00> : vector<8x128xf32>
    %39 = tpu.matmul %31, %38, %cst_25 {dimension_numbers = #tpu.dot_dimension_numbers<[1], [0], [0], [1], [0, 0, 1, 1], [], []>} : vector<8x32xf32>, vector<32x128xf32>, vector<8x128xf32> -> vector<8x128xf32>
    %c1 = arith.constant 1 : index
    %c0_26 = arith.constant 0 : index
    %c0_27 = arith.constant 0 : index
    %40 = vector.load %arg10[%c1, %c0_26, %c0_27] : memref<2x8x32xf32, #tpu.memory_space<vmem>>, vector<1x8x32xf32>
    %41 = vector.shape_cast %40 : vector<1x8x32xf32> to vector<8x32xf32>
    %c0_28 = arith.constant 0 : index
    %c0_29 = arith.constant 0 : index
    %42 = vector.load %arg5[%c0_28, %c0_29] : memref<32x128xf32, #tpu.memory_space<vmem>>, vector<32x128xf32>
    %cst_30 = arith.constant dense<0.000000e+00> : vector<8x128xf32>
    %43 = tpu.matmul %41, %42, %cst_30 {dimension_numbers = #tpu.dot_dimension_numbers<[1], [0], [0], [1], [0, 0, 1, 1], [], []>} : vector<8x32xf32>, vector<32x128xf32>, vector<8x128xf32> -> vector<8x128xf32>
    %44 = arith.addf %39, %43 : vector<8x128xf32>
    %c0_31 = arith.constant 0 : index
    %c0_32 = arith.constant 0 : index
    %45 = vector.load %arg7[%c0_31, %c0_32] : memref<1x128xf32, #tpu.memory_space<vmem>>, vector<1x128xf32>
    %46 = vector.broadcast %45 : vector<1x128xf32> to vector<8x128xf32>
    %47 = arith.addf %44, %46 : vector<8x128xf32>
    %c1_33 = arith.constant 1 : index
    %c0_34 = arith.constant 0 : index
    %c0_35 = arith.constant 0 : index
    %48 = vector.load %arg11[%c1_33, %c0_34, %c0_35] : memref<2x8x32xf32, #tpu.memory_space<vmem>>, vector<1x8x32xf32>
    %49 = vector.shape_cast %48 : vector<1x8x32xf32> to vector<8x32xf32>
    %50 = arith.negf %47 : vector<8x128xf32>
    %51 = math.exp %50 : vector<8x128xf32>
    %cst_36 = arith.constant 1.000000e+00 : f32
    %52 = vector.broadcast %cst_36 : f32 to vector<8x128xf32>
    %53 = arith.addf %52, %51 : vector<8x128xf32>
    %54 = arith.divf %52, %53 : vector<8x128xf32>
    %55 = math.tanh %47 : vector<8x128xf32>
    %56 = vector.extract_strided_slice %54 {offsets = [0, 0], sizes = [8, 32], strides = [1, 1]} : vector<8x128xf32> to vector<8x32xf32>
    %57 = vector.extract_strided_slice %54 {offsets = [0, 32], sizes = [8, 32], strides = [1, 1]} : vector<8x128xf32> to vector<8x32xf32>
    %58 = vector.extract_strided_slice %55 {offsets = [0, 64], sizes = [8, 32], strides = [1, 1]} : vector<8x128xf32> to vector<8x32xf32>
    %59 = vector.extract_strided_slice %54 {offsets = [0, 96], sizes = [8, 32], strides = [1, 1]} : vector<8x128xf32> to vector<8x32xf32>
    %60 = arith.mulf %57, %49 : vector<8x32xf32>
    %61 = arith.mulf %56, %58 : vector<8x32xf32>
    %62 = arith.addf %60, %61 : vector<8x32xf32>
    %63 = math.tanh %62 : vector<8x32xf32>
    %64 = arith.mulf %59, %63 : vector<8x32xf32>
    %c1_37 = arith.constant 1 : index
    %c0_38 = arith.constant 0 : index
    %c0_39 = arith.constant 0 : index
    %65 = vector.load %arg10[%c1_37, %c0_38, %c0_39] : memref<2x8x32xf32, #tpu.memory_space<vmem>>, vector<1x8x32xf32>
    %66 = vector.shape_cast %65 : vector<1x8x32xf32> to vector<8x32xf32>
    %67 = vector.shape_cast %64 : vector<8x32xf32> to vector<1x8x32xf32>
    tpu.vector_store %arg10[%c1_37, %c0_38, %c0_39], %67 {strides = array<i32>} : memref<2x8x32xf32, #tpu.memory_space<vmem>>, vector<1x8x32xf32>,
    %c1_40 = arith.constant 1 : index
    %c0_41 = arith.constant 0 : index
    %c0_42 = arith.constant 0 : index
    %68 = vector.load %arg11[%c1_40, %c0_41, %c0_42] : memref<2x8x32xf32, #tpu.memory_space<vmem>>, vector<1x8x32xf32>
    %69 = vector.shape_cast %68 : vector<1x8x32xf32> to vector<8x32xf32>
    %70 = vector.shape_cast %62 : vector<8x32xf32> to vector<1x8x32xf32>
    tpu.vector_store %arg11[%c1_40, %c0_41, %c0_42], %70 {strides = array<i32>} : memref<2x8x32xf32, #tpu.memory_space<vmem>>, vector<1x8x32xf32>,
    %c7_i32 = arith.constant 7 : i32
    %71 = arith.cmpi eq, %arg0, %c7_i32 : i32
    %72 = arith.extui %71 : i1 to i32
    %c0_i32_43 = arith.constant 0 : i32
    %73 = arith.cmpi ne, %72, %c0_i32_43 : i32
    scf.if %73 {
      %c0_44 = arith.constant 0 : index
      %c0_45 = arith.constant 0 : index
      %c0_46 = arith.constant 0 : index
      %74 = vector.load %arg10[%c0_44, %c0_45, %c0_46] : memref<2x8x32xf32, #tpu.memory_space<vmem>>, vector<2x8x32xf32>
      %c0_47 = arith.constant 0 : index
      %c0_48 = arith.constant 0 : index
      %c0_49 = arith.constant 0 : index
      %75 = vector.load %arg8[%c0_47, %c0_48, %c0_49] : memref<2x8x32xf32, #tpu.memory_space<vmem>>, vector<2x8x32xf32>
      tpu.vector_store %arg8[%c0_47, %c0_48, %c0_49], %74 {strides = array<i32>} : memref<2x8x32xf32, #tpu.memory_space<vmem>>, vector<2x8x32xf32>,
      %c0_50 = arith.constant 0 : index
      %c0_51 = arith.constant 0 : index
      %c0_52 = arith.constant 0 : index
      %76 = vector.load %arg11[%c0_50, %c0_51, %c0_52] : memref<2x8x32xf32, #tpu.memory_space<vmem>>, vector<2x8x32xf32>
      %c0_53 = arith.constant 0 : index
      %c0_54 = arith.constant 0 : index
      %c0_55 = arith.constant 0 : index
      %77 = vector.load %arg9[%c0_53, %c0_54, %c0_55] : memref<2x8x32xf32, #tpu.memory_space<vmem>>, vector<2x8x32xf32>
      tpu.vector_store %arg9[%c0_53, %c0_54, %c0_55], %76 {strides = array<i32>} : memref<2x8x32xf32, #tpu.memory_space<vmem>>, vector<2x8x32xf32>,
    } else {
    }
    return
  }
  func.func @transform_0(%arg0: i32) -> (i32, i32, i32) {
    %c0_i32 = arith.constant 0 : i32
    %c0_i32_0 = arith.constant 0 : i32
    %c0_i32_1 = arith.constant 0 : i32
    return %arg0, %c0_i32, %c0_i32_0 : i32, i32, i32
  }
  func.func @transform_1(%arg0: i32) -> (i32, i32) {
    %c0_i32 = arith.constant 0 : i32
    %c0_i32_0 = arith.constant 0 : i32
    %c0_i32_1 = arith.constant 0 : i32
    return %c0_i32, %c0_i32_0 : i32, i32
  }
  func.func @transform_2(%arg0: i32) -> (i32, i32) {
    %c0_i32 = arith.constant 0 : i32
    %c0_i32_0 = arith.constant 0 : i32
    %c0_i32_1 = arith.constant 0 : i32
    return %c0_i32, %c0_i32_0 : i32, i32
  }
  func.func @transform_3(%arg0: i32) -> (i32, i32) {
    %c0_i32 = arith.constant 0 : i32
    %c0_i32_0 = arith.constant 0 : i32
    %c0_i32_1 = arith.constant 0 : i32
    return %c0_i32, %c0_i32_0 : i32, i32
  }
  func.func @transform_4(%arg0: i32) -> (i32, i32) {
    %c0_i32 = arith.constant 0 : i32
    %c0_i32_0 = arith.constant 0 : i32
    %c0_i32_1 = arith.constant 0 : i32
    return %c0_i32, %c0_i32_0 : i32, i32
  }
  func.func @transform_5(%arg0: i32) -> (i32, i32) {
    %c0_i32 = arith.constant 0 : i32
    %c0_i32_0 = arith.constant 0 : i32
    %c0_i32_1 = arith.constant 0 : i32
    return %c0_i32, %c0_i32_0 : i32, i32
  }
  func.func @transform_6(%arg0: i32) -> (i32, i32) {
    %c0_i32 = arith.constant 0 : i32
    %c0_i32_0 = arith.constant 0 : i32
    %c0_i32_1 = arith.constant 0 : i32
    return %c0_i32, %c0_i32_0 : i32, i32
  }
  func.func @transform_7(%arg0: i32) -> (i32, i32, i32) {
    %c0_i32 = arith.constant 0 : i32
    %c0_i32_0 = arith.constant 0 : i32
    %c0_i32_1 = arith.constant 0 : i32
    %c0_i32_2 = arith.constant 0 : i32
    return %c0_i32, %c0_i32_0, %c0_i32_1 : i32, i32, i32
  }
  func.func @transform_8(%arg0: i32) -> (i32, i32, i32) {
    %c0_i32 = arith.constant 0 : i32
    %c0_i32_0 = arith.constant 0 : i32
    %c0_i32_1 = arith.constant 0 : i32
    %c0_i32_2 = arith.constant 0 : i32
    return %c0_i32, %c0_i32_0, %c0_i32_1 : i32, i32, i32
  }
}

module attributes {stable_mosaic.version = 11 : i64} {
  func.func @kernel(%arg0: i32, %arg1: memref<8x32xf32, #tpu.memory_space<vmem>>, %arg2: memref<2x8x32xf32, #tpu.memory_space<vmem>>, %arg3: memref<2x8x32xf32, #tpu.memory_space<vmem>>, %arg4: memref<32x128xf32, #tpu.memory_space<vmem>>, %arg5: memref<32x128xf32, #tpu.memory_space<vmem>>, %arg6: memref<32x128xf32, #tpu.memory_space<vmem>>, %arg7: memref<32x128xf32, #tpu.memory_space<vmem>>, %arg8: memref<1x128xf32, #tpu.memory_space<vmem>>, %arg9: memref<1x128xf32, #tpu.memory_space<vmem>>, %arg10: memref<128x32xf32, #tpu.memory_space<vmem>>, %arg11: memref<32x128xf32, #tpu.memory_space<vmem>>, %arg12: memref<1x128xf32, #tpu.memory_space<vmem>>, %arg13: memref<1x8x128xf32, #tpu.memory_space<vmem>>, %arg14: memref<2x8x32xf32, #tpu.memory_space<vmem>>, %arg15: memref<2x8x32xf32, #tpu.memory_space<vmem>>, %arg16: memref<8x32xf32, #tpu.memory_space<vmem>>) attributes {dimension_semantics = [#tpu.dimension_semantics<arbitrary>], iteration_bounds = array<i64: 5>, scalar_prefetch = 0 : i64, scratch_operands = 3 : i64, tpu.core_type = #tpu.core_type<tc>, window_params = [{pipeline_mode = #tpu.pipeline_mode<synchronous>, transform_indices = @transform_0, window_bounds = array<i64: 8, 32>}, {pipeline_mode = #tpu.pipeline_mode<synchronous>, transform_indices = @transform_1, window_bounds = array<i64: 2, 8, 32>}, {pipeline_mode = #tpu.pipeline_mode<synchronous>, transform_indices = @transform_2, window_bounds = array<i64: 2, 8, 32>}, {pipeline_mode = #tpu.pipeline_mode<synchronous>, transform_indices = @transform_3, window_bounds = array<i64: 32, 128>}, {pipeline_mode = #tpu.pipeline_mode<synchronous>, transform_indices = @transform_4, window_bounds = array<i64: 32, 128>}, {pipeline_mode = #tpu.pipeline_mode<synchronous>, transform_indices = @transform_5, window_bounds = array<i64: 32, 128>}, {pipeline_mode = #tpu.pipeline_mode<synchronous>, transform_indices = @transform_6, window_bounds = array<i64: 32, 128>}, {pipeline_mode = #tpu.pipeline_mode<synchronous>, transform_indices = @transform_7, window_bounds = array<i64: 1, 128>}, {pipeline_mode = #tpu.pipeline_mode<synchronous>, transform_indices = @transform_8, window_bounds = array<i64: 1, 128>}, {pipeline_mode = #tpu.pipeline_mode<synchronous>, transform_indices = @transform_9, window_bounds = array<i64: 128, 32>}, {pipeline_mode = #tpu.pipeline_mode<synchronous>, transform_indices = @transform_10, window_bounds = array<i64: 32, 128>}, {pipeline_mode = #tpu.pipeline_mode<synchronous>, transform_indices = @transform_11, window_bounds = array<i64: 1, 128>}, {transform_indices = @transform_12, window_bounds = array<i64: 1, 8, 128>}]} {
    %c0_i32 = arith.constant 0 : i32
    %0 = arith.cmpi eq, %arg0, %c0_i32 : i32
    %1 = arith.extui %0 : i1 to i32
    %c0_i32_0 = arith.constant 0 : i32
    %2 = arith.cmpi ne, %1, %c0_i32_0 : i32
    scf.if %2 {
      %c0_58 = arith.constant 0 : index
      %c0_59 = arith.constant 0 : index
      %c0_60 = arith.constant 0 : index
      %95 = vector.load %arg2[%c0_58, %c0_59, %c0_60] : memref<2x8x32xf32, #tpu.memory_space<vmem>>, vector<2x8x32xf32>
      %c0_61 = arith.constant 0 : index
      %c0_62 = arith.constant 0 : index
      %c0_63 = arith.constant 0 : index
      %96 = vector.load %arg14[%c0_61, %c0_62, %c0_63] : memref<2x8x32xf32, #tpu.memory_space<vmem>>, vector<2x8x32xf32>
      tpu.vector_store %arg14[%c0_61, %c0_62, %c0_63], %95 {strides = array<i32>} : memref<2x8x32xf32, #tpu.memory_space<vmem>>, vector<2x8x32xf32>,
      %c0_64 = arith.constant 0 : index
      %c0_65 = arith.constant 0 : index
      %c0_66 = arith.constant 0 : index
      %97 = vector.load %arg3[%c0_64, %c0_65, %c0_66] : memref<2x8x32xf32, #tpu.memory_space<vmem>>, vector<2x8x32xf32>
      %c0_67 = arith.constant 0 : index
      %c0_68 = arith.constant 0 : index
      %c0_69 = arith.constant 0 : index
      %98 = vector.load %arg15[%c0_67, %c0_68, %c0_69] : memref<2x8x32xf32, #tpu.memory_space<vmem>>, vector<2x8x32xf32>
      tpu.vector_store %arg15[%c0_67, %c0_68, %c0_69], %97 {strides = array<i32>} : memref<2x8x32xf32, #tpu.memory_space<vmem>>, vector<2x8x32xf32>,
      %c0_70 = arith.constant 0 : index
      %c0_71 = arith.constant 0 : index
      %99 = vector.load %arg1[%c0_70, %c0_71] : memref<8x32xf32, #tpu.memory_space<vmem>>, vector<8x32xf32>
      %c0_72 = arith.constant 0 : index
      %c0_73 = arith.constant 0 : index
      %100 = vector.load %arg16[%c0_72, %c0_73] : memref<8x32xf32, #tpu.memory_space<vmem>>, vector<8x32xf32>
      tpu.vector_store %arg16[%c0_72, %c0_73], %99 {strides = array<i32>} : memref<8x32xf32, #tpu.memory_space<vmem>>, vector<8x32xf32>,
    } else {
    }
    %c0 = arith.constant 0 : index
    %c0_1 = arith.constant 0 : index
    %3 = vector.load %arg16[%c0, %c0_1] : memref<8x32xf32, #tpu.memory_space<vmem>>, vector<8x32xf32>
    %c0_2 = arith.constant 0 : index
    %c0_3 = arith.constant 0 : index
    %4 = vector.load %arg4[%c0_2, %c0_3] : memref<32x128xf32, #tpu.memory_space<vmem>>, vector<32x128xf32>
    %cst = arith.constant dense<0.000000e+00> : vector<8x128xf32>
    %5 = tpu.matmul %3, %4, %cst {dimension_numbers = #tpu.dot_dimension_numbers<[1], [0], [0], [1], [0, 0, 1, 1], [], []>} : vector<8x32xf32>, vector<32x128xf32>, vector<8x128xf32> -> vector<8x128xf32>
    %c0_4 = arith.constant 0 : index
    %c0_5 = arith.constant 0 : index
    %c0_6 = arith.constant 0 : index
    %6 = vector.load %arg14[%c0_4, %c0_5, %c0_6] : memref<2x8x32xf32, #tpu.memory_space<vmem>>, vector<1x8x32xf32>
    %7 = vector.shape_cast %6 : vector<1x8x32xf32> to vector<8x32xf32>
    %c0_7 = arith.constant 0 : index
    %c0_8 = arith.constant 0 : index
    %8 = vector.load %arg6[%c0_7, %c0_8] : memref<32x128xf32, #tpu.memory_space<vmem>>, vector<32x128xf32>
    %cst_9 = arith.constant dense<0.000000e+00> : vector<8x128xf32>
    %9 = tpu.matmul %7, %8, %cst_9 {dimension_numbers = #tpu.dot_dimension_numbers<[1], [0], [0], [1], [0, 0, 1, 1], [], []>} : vector<8x32xf32>, vector<32x128xf32>, vector<8x128xf32> -> vector<8x128xf32>
    %10 = arith.addf %5, %9 : vector<8x128xf32>
    %c0_10 = arith.constant 0 : index
    %c0_11 = arith.constant 0 : index
    %11 = vector.load %arg8[%c0_10, %c0_11] : memref<1x128xf32, #tpu.memory_space<vmem>>, vector<1x128xf32>
    %12 = vector.broadcast %11 : vector<1x128xf32> to vector<8x128xf32>
    %13 = arith.addf %10, %12 : vector<8x128xf32>
    %c0_12 = arith.constant 0 : index
    %c0_13 = arith.constant 0 : index
    %c0_14 = arith.constant 0 : index
    %14 = vector.load %arg15[%c0_12, %c0_13, %c0_14] : memref<2x8x32xf32, #tpu.memory_space<vmem>>, vector<1x8x32xf32>
    %15 = vector.shape_cast %14 : vector<1x8x32xf32> to vector<8x32xf32>
    %16 = arith.negf %13 : vector<8x128xf32>
    %17 = math.exp %16 : vector<8x128xf32>
    %cst_15 = arith.constant 1.000000e+00 : f32
    %18 = vector.broadcast %cst_15 : f32 to vector<8x128xf32>
    %19 = arith.addf %18, %17 : vector<8x128xf32>
    %20 = arith.divf %18, %19 : vector<8x128xf32>
    %21 = math.tanh %13 : vector<8x128xf32>
    %22 = vector.extract_strided_slice %20 {offsets = [0, 0], sizes = [8, 32], strides = [1, 1]} : vector<8x128xf32> to vector<8x32xf32>
    %23 = vector.extract_strided_slice %20 {offsets = [0, 32], sizes = [8, 32], strides = [1, 1]} : vector<8x128xf32> to vector<8x32xf32>
    %24 = vector.extract_strided_slice %21 {offsets = [0, 64], sizes = [8, 32], strides = [1, 1]} : vector<8x128xf32> to vector<8x32xf32>
    %25 = vector.extract_strided_slice %20 {offsets = [0, 96], sizes = [8, 32], strides = [1, 1]} : vector<8x128xf32> to vector<8x32xf32>
    %26 = arith.mulf %23, %15 : vector<8x32xf32>
    %27 = arith.mulf %22, %24 : vector<8x32xf32>
    %28 = arith.addf %26, %27 : vector<8x32xf32>
    %29 = math.tanh %28 : vector<8x32xf32>
    %30 = arith.mulf %25, %29 : vector<8x32xf32>
    %c0_16 = arith.constant 0 : index
    %c0_17 = arith.constant 0 : index
    %c0_18 = arith.constant 0 : index
    %31 = vector.load %arg14[%c0_16, %c0_17, %c0_18] : memref<2x8x32xf32, #tpu.memory_space<vmem>>, vector<1x8x32xf32>
    %32 = vector.shape_cast %31 : vector<1x8x32xf32> to vector<8x32xf32>
    %33 = vector.shape_cast %30 : vector<8x32xf32> to vector<1x8x32xf32>
    tpu.vector_store %arg14[%c0_16, %c0_17, %c0_18], %33 {strides = array<i32>} : memref<2x8x32xf32, #tpu.memory_space<vmem>>, vector<1x8x32xf32>,
    %c0_19 = arith.constant 0 : index
    %c0_20 = arith.constant 0 : index
    %c0_21 = arith.constant 0 : index
    %34 = vector.load %arg15[%c0_19, %c0_20, %c0_21] : memref<2x8x32xf32, #tpu.memory_space<vmem>>, vector<1x8x32xf32>
    %35 = vector.shape_cast %34 : vector<1x8x32xf32> to vector<8x32xf32>
    %36 = vector.shape_cast %28 : vector<8x32xf32> to vector<1x8x32xf32>
    tpu.vector_store %arg15[%c0_19, %c0_20, %c0_21], %36 {strides = array<i32>} : memref<2x8x32xf32, #tpu.memory_space<vmem>>, vector<1x8x32xf32>,
    %c0_22 = arith.constant 0 : index
    %c0_23 = arith.constant 0 : index
    %37 = vector.load %arg5[%c0_22, %c0_23] : memref<32x128xf32, #tpu.memory_space<vmem>>, vector<32x128xf32>
    %cst_24 = arith.constant dense<0.000000e+00> : vector<8x128xf32>
    %38 = tpu.matmul %30, %37, %cst_24 {dimension_numbers = #tpu.dot_dimension_numbers<[1], [0], [0], [1], [0, 0, 1, 1], [], []>} : vector<8x32xf32>, vector<32x128xf32>, vector<8x128xf32> -> vector<8x128xf32>
    %c1 = arith.constant 1 : index
    %c0_25 = arith.constant 0 : index
    %c0_26 = arith.constant 0 : index
    %39 = vector.load %arg14[%c1, %c0_25, %c0_26] : memref<2x8x32xf32, #tpu.memory_space<vmem>>, vector<1x8x32xf32>
    %40 = vector.shape_cast %39 : vector<1x8x32xf32> to vector<8x32xf32>
    %c0_27 = arith.constant 0 : index
    %c0_28 = arith.constant 0 : index
    %41 = vector.load %arg7[%c0_27, %c0_28] : memref<32x128xf32, #tpu.memory_space<vmem>>, vector<32x128xf32>
    %cst_29 = arith.constant dense<0.000000e+00> : vector<8x128xf32>
    %42 = tpu.matmul %40, %41, %cst_29 {dimension_numbers = #tpu.dot_dimension_numbers<[1], [0], [0], [1], [0, 0, 1, 1], [], []>} : vector<8x32xf32>, vector<32x128xf32>, vector<8x128xf32> -> vector<8x128xf32>
    %43 = arith.addf %38, %42 : vector<8x128xf32>
    %c0_30 = arith.constant 0 : index
    %c0_31 = arith.constant 0 : index
    %44 = vector.load %arg9[%c0_30, %c0_31] : memref<1x128xf32, #tpu.memory_space<vmem>>, vector<1x128xf32>
    %45 = vector.broadcast %44 : vector<1x128xf32> to vector<8x128xf32>
    %46 = arith.addf %43, %45 : vector<8x128xf32>
    %c1_32 = arith.constant 1 : index
    %c0_33 = arith.constant 0 : index
    %c0_34 = arith.constant 0 : index
    %47 = vector.load %arg15[%c1_32, %c0_33, %c0_34] : memref<2x8x32xf32, #tpu.memory_space<vmem>>, vector<1x8x32xf32>
    %48 = vector.shape_cast %47 : vector<1x8x32xf32> to vector<8x32xf32>
    %49 = arith.negf %46 : vector<8x128xf32>
    %50 = math.exp %49 : vector<8x128xf32>
    %cst_35 = arith.constant 1.000000e+00 : f32
    %51 = vector.broadcast %cst_35 : f32 to vector<8x128xf32>
    %52 = arith.addf %51, %50 : vector<8x128xf32>
    %53 = arith.divf %51, %52 : vector<8x128xf32>
    %54 = math.tanh %46 : vector<8x128xf32>
    %55 = vector.extract_strided_slice %53 {offsets = [0, 0], sizes = [8, 32], strides = [1, 1]} : vector<8x128xf32> to vector<8x32xf32>
    %56 = vector.extract_strided_slice %53 {offsets = [0, 32], sizes = [8, 32], strides = [1, 1]} : vector<8x128xf32> to vector<8x32xf32>
    %57 = vector.extract_strided_slice %54 {offsets = [0, 64], sizes = [8, 32], strides = [1, 1]} : vector<8x128xf32> to vector<8x32xf32>
    %58 = vector.extract_strided_slice %53 {offsets = [0, 96], sizes = [8, 32], strides = [1, 1]} : vector<8x128xf32> to vector<8x32xf32>
    %59 = arith.mulf %56, %48 : vector<8x32xf32>
    %60 = arith.mulf %55, %57 : vector<8x32xf32>
    %61 = arith.addf %59, %60 : vector<8x32xf32>
    %62 = math.tanh %61 : vector<8x32xf32>
    %63 = arith.mulf %58, %62 : vector<8x32xf32>
    %c1_36 = arith.constant 1 : index
    %c0_37 = arith.constant 0 : index
    %c0_38 = arith.constant 0 : index
    %64 = vector.load %arg14[%c1_36, %c0_37, %c0_38] : memref<2x8x32xf32, #tpu.memory_space<vmem>>, vector<1x8x32xf32>
    %65 = vector.shape_cast %64 : vector<1x8x32xf32> to vector<8x32xf32>
    %66 = vector.shape_cast %63 : vector<8x32xf32> to vector<1x8x32xf32>
    tpu.vector_store %arg14[%c1_36, %c0_37, %c0_38], %66 {strides = array<i32>} : memref<2x8x32xf32, #tpu.memory_space<vmem>>, vector<1x8x32xf32>,
    %c1_39 = arith.constant 1 : index
    %c0_40 = arith.constant 0 : index
    %c0_41 = arith.constant 0 : index
    %67 = vector.load %arg15[%c1_39, %c0_40, %c0_41] : memref<2x8x32xf32, #tpu.memory_space<vmem>>, vector<1x8x32xf32>
    %68 = vector.shape_cast %67 : vector<1x8x32xf32> to vector<8x32xf32>
    %69 = vector.shape_cast %61 : vector<8x32xf32> to vector<1x8x32xf32>
    tpu.vector_store %arg15[%c1_39, %c0_40, %c0_41], %69 {strides = array<i32>} : memref<2x8x32xf32, #tpu.memory_space<vmem>>, vector<1x8x32xf32>,
    %c0_42 = arith.constant 0 : index
    %c0_43 = arith.constant 0 : index
    %70 = vector.load %arg11[%c0_42, %c0_43] : memref<32x128xf32, #tpu.memory_space<vmem>>, vector<32x128xf32>
    %cst_44 = arith.constant dense<0.000000e+00> : vector<8x128xf32>
    %71 = tpu.matmul %63, %70, %cst_44 {dimension_numbers = #tpu.dot_dimension_numbers<[1], [0], [0], [1], [0, 0, 1, 1], [], []>} : vector<8x32xf32>, vector<32x128xf32>, vector<8x128xf32> -> vector<8x128xf32>
    %c0_45 = arith.constant 0 : index
    %c0_46 = arith.constant 0 : index
    %72 = vector.load %arg12[%c0_45, %c0_46] : memref<1x128xf32, #tpu.memory_space<vmem>>, vector<1x128xf32>
    %73 = vector.broadcast %72 : vector<1x128xf32> to vector<8x128xf32>
    %74 = arith.addf %71, %73 : vector<8x128xf32>
    %c0_47 = arith.constant 0 : index
    %c0_48 = arith.constant 0 : index
    %c0_49 = arith.constant 0 : index
    %75 = vector.load %arg13[%c0_47, %c0_48, %c0_49] : memref<1x8x128xf32, #tpu.memory_space<vmem>>, vector<1x8x128xf32>
    %76 = vector.shape_cast %75 : vector<1x8x128xf32> to vector<8x128xf32>
    %77 = vector.shape_cast %74 : vector<8x128xf32> to vector<1x8x128xf32>
    tpu.vector_store %arg13[%c0_47, %c0_48, %c0_49], %77 {strides = array<i32>} : memref<1x8x128xf32, #tpu.memory_space<vmem>>, vector<1x8x128xf32>,
    %cst_50 = arith.constant dense<0xFF800000> : vector<8xf32>
    %78 = vector.multi_reduction <maximumf>, %74, %cst_50 [1] : vector<8x128xf32> to vector<8xf32>
    %79 = vector.shape_cast %78 : vector<8xf32> to vector<8x1xf32>
    %80 = tpu.iota {dimensions = array<i32: 1>} : vector<8x128xi32>
    %81 = arith.sitofp %80 : vector<8x128xi32> to vector<8x128xf32>
    %82 = vector.broadcast %79 : vector<8x1xf32> to vector<8x128xf32>
    %83 = arith.cmpf oeq, %74, %82 : vector<8x128xf32>
    %cst_51 = arith.constant 1.280000e+02 : f32
    %84 = vector.broadcast %cst_51 : f32 to vector<8x128xf32>
    %85 = arith.select %83, %81, %84 : vector<8x128xi1>, vector<8x128xf32>
    %cst_52 = arith.constant dense<0x7F800000> : vector<8xf32>
    %86 = vector.multi_reduction <minimumf>, %85, %cst_52 [1] : vector<8x128xf32> to vector<8xf32>
    %87 = vector.shape_cast %86 : vector<8xf32> to vector<8x1xf32>
    %88 = vector.broadcast %87 : vector<8x1xf32> to vector<8x128xf32>
    %89 = arith.cmpf oeq, %81, %88 : vector<8x128xf32>
    %90 = arith.extui %89 : vector<8x128xi1> to vector<8x128xi32>
    %91 = arith.sitofp %90 : vector<8x128xi32> to vector<8x128xf32>
    %c0_53 = arith.constant 0 : index
    %c0_54 = arith.constant 0 : index
    %92 = vector.load %arg10[%c0_53, %c0_54] : memref<128x32xf32, #tpu.memory_space<vmem>>, vector<128x32xf32>
    %cst_55 = arith.constant dense<0.000000e+00> : vector<8x32xf32>
    %93 = tpu.matmul %91, %92, %cst_55 {dimension_numbers = #tpu.dot_dimension_numbers<[1], [0], [0], [1], [0, 0, 1, 1], [], []>} : vector<8x128xf32>, vector<128x32xf32>, vector<8x32xf32> -> vector<8x32xf32>
    %c0_56 = arith.constant 0 : index
    %c0_57 = arith.constant 0 : index
    %94 = vector.load %arg16[%c0_56, %c0_57] : memref<8x32xf32, #tpu.memory_space<vmem>>, vector<8x32xf32>
    tpu.vector_store %arg16[%c0_56, %c0_57], %93 {strides = array<i32>} : memref<8x32xf32, #tpu.memory_space<vmem>>, vector<8x32xf32>,
    return
  }
  func.func @transform_0(%arg0: i32) -> (i32, i32) {
    %c0_i32 = arith.constant 0 : i32
    %c0_i32_0 = arith.constant 0 : i32
    %c0_i32_1 = arith.constant 0 : i32
    return %c0_i32, %c0_i32_0 : i32, i32
  }
  func.func @transform_1(%arg0: i32) -> (i32, i32, i32) {
    %c0_i32 = arith.constant 0 : i32
    %c0_i32_0 = arith.constant 0 : i32
    %c0_i32_1 = arith.constant 0 : i32
    %c0_i32_2 = arith.constant 0 : i32
    return %c0_i32, %c0_i32_0, %c0_i32_1 : i32, i32, i32
  }
  func.func @transform_2(%arg0: i32) -> (i32, i32, i32) {
    %c0_i32 = arith.constant 0 : i32
    %c0_i32_0 = arith.constant 0 : i32
    %c0_i32_1 = arith.constant 0 : i32
    %c0_i32_2 = arith.constant 0 : i32
    return %c0_i32, %c0_i32_0, %c0_i32_1 : i32, i32, i32
  }
  func.func @transform_3(%arg0: i32) -> (i32, i32) {
    %c0_i32 = arith.constant 0 : i32
    %c0_i32_0 = arith.constant 0 : i32
    %c0_i32_1 = arith.constant 0 : i32
    return %c0_i32, %c0_i32_0 : i32, i32
  }
  func.func @transform_4(%arg0: i32) -> (i32, i32) {
    %c0_i32 = arith.constant 0 : i32
    %c0_i32_0 = arith.constant 0 : i32
    %c0_i32_1 = arith.constant 0 : i32
    return %c0_i32, %c0_i32_0 : i32, i32
  }
  func.func @transform_5(%arg0: i32) -> (i32, i32) {
    %c0_i32 = arith.constant 0 : i32
    %c0_i32_0 = arith.constant 0 : i32
    %c0_i32_1 = arith.constant 0 : i32
    return %c0_i32, %c0_i32_0 : i32, i32
  }
  func.func @transform_6(%arg0: i32) -> (i32, i32) {
    %c0_i32 = arith.constant 0 : i32
    %c0_i32_0 = arith.constant 0 : i32
    %c0_i32_1 = arith.constant 0 : i32
    return %c0_i32, %c0_i32_0 : i32, i32
  }
  func.func @transform_7(%arg0: i32) -> (i32, i32) {
    %c0_i32 = arith.constant 0 : i32
    %c0_i32_0 = arith.constant 0 : i32
    %c0_i32_1 = arith.constant 0 : i32
    return %c0_i32, %c0_i32_0 : i32, i32
  }
  func.func @transform_8(%arg0: i32) -> (i32, i32) {
    %c0_i32 = arith.constant 0 : i32
    %c0_i32_0 = arith.constant 0 : i32
    %c0_i32_1 = arith.constant 0 : i32
    return %c0_i32, %c0_i32_0 : i32, i32
  }
  func.func @transform_9(%arg0: i32) -> (i32, i32) {
    %c0_i32 = arith.constant 0 : i32
    %c0_i32_0 = arith.constant 0 : i32
    %c0_i32_1 = arith.constant 0 : i32
    return %c0_i32, %c0_i32_0 : i32, i32
  }
  func.func @transform_10(%arg0: i32) -> (i32, i32) {
    %c0_i32 = arith.constant 0 : i32
    %c0_i32_0 = arith.constant 0 : i32
    %c0_i32_1 = arith.constant 0 : i32
    return %c0_i32, %c0_i32_0 : i32, i32
  }
  func.func @transform_11(%arg0: i32) -> (i32, i32) {
    %c0_i32 = arith.constant 0 : i32
    %c0_i32_0 = arith.constant 0 : i32
    %c0_i32_1 = arith.constant 0 : i32
    return %c0_i32, %c0_i32_0 : i32, i32
  }
  func.func @transform_12(%arg0: i32) -> (i32, i32, i32) {
    %c0_i32 = arith.constant 0 : i32
    %c0_i32_0 = arith.constant 0 : i32
    %c0_i32_1 = arith.constant 0 : i32
    return %arg0, %c0_i32, %c0_i32_0 : i32, i32, i32
  }
}

</mosaic_0001>

<llo_original>
// kernel: _forward.2
$region0: #{_forward.2}
  #allocation0 [shape = 'u32[]', space=smem, size = 0x4, offset = 0x4, fixed_abs, tag = 'smem constant byte address 0x4 - core index']
  #allocation1 [shape = 'u32[144,128]{1,0:T(1,128)}', space=vmem, size = 0x12000, scoped, tag = 'internal scratch']
  #allocation2 [shape = 'f32[2,8,32]{2,1,0:T(8,128)}', space=vmem, size = 0x2000, scoped, tag = 'scratch operand']
  #allocation3 [shape = 'f32[2,8,32]{2,1,0:T(8,128)}', space=vmem, size = 0x2000, scoped, tag = 'scratch operand']
  %s0 = inlined_call_operand.vmem [shape: f32[8,8,32], index: 0, kind: input, shape index: {}]
  %s1 = inlined_call_operand.vmem [shape: f32[32,128], index: 1, kind: input, shape index: {}]
  %s2 = inlined_call_operand.vmem [shape: f32[32,128], index: 2, kind: input, shape index: {}]
  %s3 = inlined_call_operand.vmem [shape: f32[32,128], index: 3, kind: input, shape index: {}]
  %s4 = inlined_call_operand.vmem [shape: f32[32,128], index: 4, kind: input, shape index: {}]
  %s5 = inlined_call_operand.vmem [shape: f32[1,128], index: 5, kind: input, shape index: {}]
  %s6 = inlined_call_operand.vmem [shape: f32[1,128], index: 6, kind: input, shape index: {}]
  %s7 = inlined_call_operand.vmem [shape: f32[2,8,32], index: 7, kind: output, shape index: {0}]
  %s8 = inlined_call_operand.vmem [shape: f32[2,8,32], index: 8, kind: output, shape index: {1}]
  %9 = xla_tuple %s7, %s8
  %s10 = sld [smem:[#allocation0]]
  $region77: #{_forward.2} parent=0
    _
  %s12 = ssub.s32 1, %s10
  %s13 = scalar_select 0, %s12, %s10
  loop: start=0, step=1, limit=10
  $region2: #{_forward.2} parent=0 // loop_pre_header
    _
  $region3: #{_forward.2} parent=0 // loop_header
    %s15 = sphi 0, %s19
    %p16 = scmp.ge.s32.totalorder %s15, 10
    %s25 = sphi 0, %s27
    %s28 = sphi 0, %s25
    %s29 = sphi 0, %s28
    %s45 = sphi 0, %s29
    %s49 = sphi 0, %s49
    %s51 = sphi 0, %s49
    %s52 = sphi 0, %s51
    %s66 = sphi 0, %s52
    %s70 = sphi 0, %s70
    %s72 = sphi 0, %s70
    %s73 = sphi 0, %s72
    %s87 = sphi 0, %s73
    %s91 = sphi 0, %s91
    %s93 = sphi 0, %s91
    %s94 = sphi 0, %s93
    %s108 = sphi 0, %s94
    %s112 = sphi 0, %s112
    %s114 = sphi 0, %s112
    %s115 = sphi 0, %s114
    %s129 = sphi 0, %s115
    %s133 = sphi 0, %s133
    %s135 = sphi 0, %s133
    %s136 = sphi 0, %s135
    %s150 = sphi 0, %s136
    %s154 = sphi 0, %s154
    %s156 = sphi 0, %s154
    %s157 = sphi 0, %s156
    %s171 = sphi 0, %s157
    %s175 = sphi 0, %s175
    %s177 = sphi 0, %s175
    %s178 = sphi 0, %s177
    %s192 = sphi 0, %s178
    %s196 = sphi 0, %s196
    %s198 = sphi 0, %s196
    %s199 = sphi 0, %s198
    %s213 = sphi 0, %s199
  $region4: #{_forward.2} parent=0 // loop_header_branch
    %18 = sbr.rel (%p16) target = $region8
  $region5: #{_forward.2} parent=0 // loop_body
    %s20 = ssub.s32 %s15, 1
    %s21 = ssub.s32 %s15, 2
    %s22 = sadd.s32 %s15, 1
    %s23 = ssub.s32 %s15, %s22
    %p24 = scmp.eq.s32.totalorder %s23, 0
    %s26 = sadd.s32 %s25, 1
    %s27 = scalar_select %p24, %s25, %s26
    %p30 = pneg %p24
    %p31 = scmp.eq.s32.totalorder %s15, 7
    %p32 = por %p30, %p31
    %p33 = scmp.ne.s32.totalorder %s25, %s28
    %p34 = scmp.eq.s32.totalorder %s15, 0
    %p35 = por %p33, %p34
    %p36 = scmp.ne.s32.totalorder %s25, %s28
    %p37 = scmp.eq.s32.totalorder %s20, 7
    %p38 = por %p36, %p37
    %p39 = scmp.ne.s32.totalorder %s28, %s29
    %p40 = scmp.eq.s32.totalorder %s20, 0
    %p41 = por %p39, %p40
    %p42 = scmp.ne.s32.totalorder %s28, %s29
    %p43 = scmp.eq.s32.totalorder %s21, 7
    %p44 = por %p42, %p43
    %p46 = scmp.ne.s32.totalorder %s29, %s45
    %p47 = scmp.eq.s32.totalorder %s21, 0
    %p48 = por %p46, %p47
    %s50 = sadd.s32 %s49, 1
    %p53 = scmp.eq.s32.totalorder %s15, 7
    %p54 = scmp.ne.s32.totalorder %s49, %s51
    %p55 = scmp.eq.s32.totalorder %s15, 0
    %p56 = por %p54, %p55
    %p57 = scmp.ne.s32.totalorder %s49, %s51
    %p58 = scmp.eq.s32.totalorder %s20, 7
    %p59 = por %p57, %p58
    %p60 = scmp.ne.s32.totalorder %s51, %s52
    %p61 = scmp.eq.s32.totalorder %s20, 0
    %p62 = por %p60, %p61
    %p63 = scmp.ne.s32.totalorder %s51, %s52
    %p64 = scmp.eq.s32.totalorder %s21, 7
    %p65 = por %p63, %p64
    %p67 = scmp.ne.s32.totalorder %s52, %s66
    %p68 = scmp.eq.s32.totalorder %s21, 0
    %p69 = por %p67, %p68
    %s71 = sadd.s32 %s70, 1
    %p74 = scmp.eq.s32.totalorder %s15, 7
    %p75 = scmp.ne.s32.totalorder %s70, %s72
    %p76 = scmp.eq.s32.totalorder %s15, 0
    %p77 = por %p75, %p76
    %p78 = scmp.ne.s32.totalorder %s70, %s72
    %p79 = scmp.eq.s32.totalorder %s20, 7
    %p80 = por %p78, %p79
    %p81 = scmp.ne.s32.totalorder %s72, %s73
    %p82 = scmp.eq.s32.totalorder %s20, 0
    %p83 = por %p81, %p82
    %p84 = scmp.ne.s32.totalorder %s72, %s73
    %p85 = scmp.eq.s32.totalorder %s21, 7
    %p86 = por %p84, %p85
    %p88 = scmp.ne.s32.totalorder %s73, %s87
    %p89 = scmp.eq.s32.totalorder %s21, 0
    %p90 = por %p88, %p89
    %s92 = sadd.s32 %s91, 1
    %p95 = scmp.eq.s32.totalorder %s15, 7
    %p96 = scmp.ne.s32.totalorder %s91, %s93
    %p97 = scmp.eq.s32.totalorder %s15, 0
    %p98 = por %p96, %p97
    %p99 = scmp.ne.s32.totalorder %s91, %s93
    %p100 = scmp.eq.s32.totalorder %s20, 7
    %p101 = por %p99, %p100
    %p102 = scmp.ne.s32.totalorder %s93, %s94
    %p103 = scmp.eq.s32.totalorder %s20, 0
    %p104 = por %p102, %p103
    %p105 = scmp.ne.s32.totalorder %s93, %s94
    %p106 = scmp.eq.s32.totalorder %s21, 7
    %p107 = por %p105, %p106
    %p109 = scmp.ne.s32.totalorder %s94, %s108
    %p110 = scmp.eq.s32.totalorder %s21, 0
    %p111 = por %p109, %p110
    %s113 = sadd.s32 %s112, 1
    %p116 = scmp.eq.s32.totalorder %s15, 7
    %p117 = scmp.ne.s32.totalorder %s112, %s114
    %p118 = scmp.eq.s32.totalorder %s15, 0
    %p119 = por %p117, %p118
    %p120 = scmp.ne.s32.totalorder %s112, %s114
    %p121 = scmp.eq.s32.totalorder %s20, 7
    %p122 = por %p120, %p121
    %p123 = scmp.ne.s32.totalorder %s114, %s115
    %p124 = scmp.eq.s32.totalorder %s20, 0
    %p125 = por %p123, %p124
    %p126 = scmp.ne.s32.totalorder %s114, %s115
    %p127 = scmp.eq.s32.totalorder %s21, 7
    %p128 = por %p126, %p127
    %p130 = scmp.ne.s32.totalorder %s115, %s129
    %p131 = scmp.eq.s32.totalorder %s21, 0
    %p132 = por %p130, %p131
    %s134 = sadd.s32 %s133, 1
    %p137 = scmp.eq.s32.totalorder %s15, 7
    %p138 = scmp.ne.s32.totalorder %s133, %s135
    %p139 = scmp.eq.s32.totalorder %s15, 0
    %p140 = por %p138, %p139
    %p141 = scmp.ne.s32.totalorder %s133, %s135
    %p142 = scmp.eq.s32.totalorder %s20, 7
    %p143 = por %p141, %p142
    %p144 = scmp.ne.s32.totalorder %s135, %s136
    %p145 = scmp.eq.s32.totalorder %s20, 0
    %p146 = por %p144, %p145
    %p147 = scmp.ne.s32.totalorder %s135, %s136
    %p148 = scmp.eq.s32.totalorder %s21, 7
    %p149 = por %p147, %p148
    %p151 = scmp.ne.s32.totalorder %s136, %s150
    %p152 = scmp.eq.s32.totalorder %s21, 0
    %p153 = por %p151, %p152
    %s155 = sadd.s32 %s154, 1
    %p158 = scmp.eq.s32.totalorder %s15, 7
    %p159 = scmp.ne.s32.totalorder %s154, %s156
    %p160 = scmp.eq.s32.totalorder %s15, 0
    %p161 = por %p159, %p160
    %p162 = scmp.ne.s32.totalorder %s154, %s156
    %p163 = scmp.eq.s32.totalorder %s20, 7
    %p164 = por %p162, %p163
    %p165 = scmp.ne.s32.totalorder %s156, %s157
    %p166 = scmp.eq.s32.totalorder %s20, 0
    %p167 = por %p165, %p166
    %p168 = scmp.ne.s32.totalorder %s156, %s157
    %p169 = scmp.eq.s32.totalorder %s21, 7
    %p170 = por %p168, %p169
    %p172 = scmp.ne.s32.totalorder %s157, %s171
    %p173 = scmp.eq.s32.totalorder %s21, 0
    %p174 = por %p172, %p173
    %s176 = sadd.s32 %s175, 1
    %p179 = scmp.eq.s32.totalorder %s15, 7
    %p180 = scmp.ne.s32.totalorder %s175, %s177
    %p181 = scmp.eq.s32.totalorder %s15, 0
    %p182 = por %p180, %p181
    %p183 = scmp.ne.s32.totalorder %s175, %s177
    %p184 = scmp.eq.s32.totalorder %s20, 7
    %p185 = por %p183, %p184
    %p186 = scmp.ne.s32.totalorder %s177, %s178
    %p187 = scmp.eq.s32.totalorder %s20, 0
    %p188 = por %p186, %p187
    %p189 = scmp.ne.s32.totalorder %s177, %s178
    %p190 = scmp.eq.s32.totalorder %s21, 7
    %p191 = por %p189, %p190
    %p193 = scmp.ne.s32.totalorder %s178, %s192
    %p194 = scmp.eq.s32.totalorder %s21, 0
    %p195 = por %p193, %p194
    %s197 = sadd.s32 %s196, 1
    %p200 = scmp.eq.s32.totalorder %s15, 7
    %p201 = scmp.ne.s32.totalorder %s196, %s198
    %p202 = scmp.eq.s32.totalorder %s15, 0
    %p203 = por %p201, %p202
    %p204 = scmp.ne.s32.totalorder %s196, %s198
    %p205 = scmp.eq.s32.totalorder %s20, 7
    %p206 = por %p204, %p205
    %p207 = scmp.ne.s32.totalorder %s198, %s199
    %p208 = scmp.eq.s32.totalorder %s20, 0
    %p209 = por %p207, %p208
    %p210 = scmp.ne.s32.totalorder %s198, %s199
    %p211 = scmp.eq.s32.totalorder %s21, 7
    %p212 = por %p210, %p211
    %p214 = scmp.ne.s32.totalorder %s199, %s213
    %p215 = scmp.eq.s32.totalorder %s21, 0
    %p216 = por %p214, %p215
    %p217 = scmp.le.s32.totalorder 1, %s15
    %p218 = scmp.lt.s32.totalorder %s15, 9
    %p219 = pnand %p217, %p218
    %p220 = pneg %p219
    // Predicated region
    $region9: #{_forward.2} parent=5 // pred_check
      _
    $region10: #{_forward.2} parent=5 // pred_check_branch
      %222 = sbr.rel (%p219) target = $region12
    $region11: #{_forward.2} parent=5 // pred_region
      %s223 = ssub.s32 %s15, 1
      // Predicated region
      $region13: #{_forward.2} parent=11 // pred_check
        %p224 = pneg %p62
      $region14: #{_forward.2} parent=11 // pred_check_branch
        %226 = sbr.rel (%p224) target = $region16
      $region15: #{_forward.2} parent=11 // pred_region
        _
      $region16: #{_forward.2} parent=11 // pred_fallthru
        _
      // Predicated region
      $region17: #{_forward.2} parent=11 // pred_check
        %p227 = pneg %p83
      $region18: #{_forward.2} parent=11 // pred_check_branch
        %229 = sbr.rel (%p227) target = $region20
      $region19: #{_forward.2} parent=11 // pred_region
        _
      $region20: #{_forward.2} parent=11 // pred_fallthru
        _
      // Predicated region
      $region21: #{_forward.2} parent=11 // pred_check
        %p230 = pneg %p104
      $region22: #{_forward.2} parent=11 // pred_check_branch
        %232 = sbr.rel (%p230) target = $region24
      $region23: #{_forward.2} parent=11 // pred_region
        _
      $region24: #{_forward.2} parent=11 // pred_fallthru
        _
      // Predicated region
      $region25: #{_forward.2} parent=11 // pred_check
        %p233 = pneg %p125
      $region26: #{_forward.2} parent=11 // pred_check_branch
        %235 = sbr.rel (%p233) target = $region28
      $region27: #{_forward.2} parent=11 // pred_region
        _
      $region28: #{_forward.2} parent=11 // pred_fallthru
        _
      // Predicated region
      $region29: #{_forward.2} parent=11 // pred_check
        %p236 = pneg %p146
      $region30: #{_forward.2} parent=11 // pred_check_branch
        %238 = sbr.rel (%p236) target = $region32
      $region31: #{_forward.2} parent=11 // pred_region
        _
      $region32: #{_forward.2} parent=11 // pred_fallthru
        _
      // Predicated region
      $region33: #{_forward.2} parent=11 // pred_check
        %p239 = pneg %p167
      $region34: #{_forward.2} parent=11 // pred_check_branch
        %241 = sbr.rel (%p239) target = $region36
      $region35: #{_forward.2} parent=11 // pred_region
        _
      $region36: #{_forward.2} parent=11 // pred_fallthru
        _
    $region12: #{_forward.2} parent=5 // pred_fallthru
      _
    %p242 = scmp.lt.s32.totalorder %s15, 8
    // Predicated region
    $region37: #{_forward.2} parent=5 // pred_check
      %p243 = pneg %p242
    $region38: #{_forward.2} parent=5 // pred_check_branch
      %245 = sbr.rel (%p243) target = $region40
    $region39: #{_forward.2} parent=5 // pred_region
      // Predicated region
      $region41: #{_forward.2} parent=39 // pred_check
        %p246 = pneg %p35
      $region42: #{_forward.2} parent=39 // pred_check_branch
        %248 = sbr.rel (%p246) target = $region44
      $region43: #{_forward.2} parent=39 // pred_region
        %p249 = scmp.lt.s32.totalorder %s15, 7
        %s250 = scalar_select %p249, %s15, 7
        %s251 = smul.addr %s250, 8
        %s252 = scalar_lea.vmem %s0, %s251
      $region44: #{_forward.2} parent=39 // pred_fallthru
        _
    $region40: #{_forward.2} parent=5 // pred_fallthru
      _
    %p253 = scmp.le.s32.totalorder 1, %s15
    %p254 = scmp.lt.s32.totalorder %s15, 9
    %p255 = pnand %p253, %p254
    %p256 = pneg %p255
    // Predicated region
    $region45: #{_forward.2} parent=5 // pred_check
      _
    $region46: #{_forward.2} parent=5 // pred_check_branch
      %258 = sbr.rel (%p255) target = $region48
    $region47: #{_forward.2} parent=5 // pred_region
      %s259 = ssub.s32 %s15, 1
      %p260 = scmp.lt.s32.totalorder %s20, 7
      %s261 = scalar_select %p260, %s20, 7
      %s262 = smul.addr %s261, 8
      %s263 = scalar_lea.vmem %s0, %s262
      %p264 = pneg %p41
      %p265 = pneg %p38
      %p266 = pneg %p62
      %p267 = pneg %p59
      %p268 = pneg %p83
      %p269 = pneg %p80
      %p270 = pneg %p104
      %p271 = pneg %p101
      %p272 = pneg %p125
      %p273 = pneg %p122
      %p274 = pneg %p146
      %p275 = pneg %p143
      %p276 = pneg %p167
      %p277 = pneg %p164
      %p278 = pneg %p188
      %p279 = pneg %p185
      %p280 = pneg %p209
      %p281 = pneg %p206
      %p282 = scmp.lt.s32.totalorder %s20, 7
      %s283 = scalar_select %p282, %s20, 7
      %s284 = smul.addr %s283, 8
      %s285 = scalar_lea.vmem %s0, %s284
      %p286 = scmp.eq.s32.totalorder %s20, 0
      // Predicated region
      $region49: #{_forward.2} parent=47 // pred_check
        %p287 = pneg %p286
      $region50: #{_forward.2} parent=47 // pred_check_branch
        %289 = sbr.rel (%p287) target = $region52
      $region51: #{_forward.2} parent=47 // pred_region
        %vm290 = vcmask 261120
        %291 = vst.msk [vmem:[#allocation2] sm:$0xff] %vm290, 0.0
        %292 = vst.msk [vmem:[#allocation2 + $0x8] sm:$0xff] %vm290, 0.0
        %293 = vst.msk [vmem:[#allocation3] sm:$0xff] %vm290, 0.0
        %294 = vst.msk [vmem:[#allocation3 + $0x8] sm:$0xff] %vm290, 0.0
      $region52: #{_forward.2} parent=47 // pred_fallthru
        _
      %v295 = vld [vmem:[%s285] sm:$0xff]
      %v296 = vld [vmem:[%s1] sm:$0xff]
      %v297 = vld [vmem:[%s1 + $0x8] sm:$0xff]
      %v298 = vld [vmem:[%s1 + $0x10] sm:$0xff]
      %v299 = vld [vmem:[%s1 + $0x18] sm:$0xff]
      %v300 = vld [vmem:[#allocation2] sm:$0xff]
      %v301 = vld [vmem:[%s3] sm:$0xff]
      %v302 = vld [vmem:[%s3 + $0x8] sm:$0xff]
      %v303 = vld [vmem:[%s3 + $0x10] sm:$0xff]
      %v304 = vld [vmem:[%s3 + $0x18] sm:$0xff]
      %vm305 = vcmask 261120
      %v307 = vsel %vm305, %v300, 0
      %309 = vmatprep.subr.mxu0 0.0
      %310 = vmatpush1.msra.mxu0 %v301
      %311 = vmatprep.subr.mxu0 0.0
      %312 = vmatpush1.msra.mxu0 %v302
      %313 = vmatprep.subr.mxu0 0.0
      %314 = vmatpush1.msra.mxu0 %v303
      %315 = vmatprep.subr.mxu0 0.0
      %316 = vmatpush1.msra.mxu0 %v304
      %317 = vmatprep.subr.mxu0 0.0
      %318 = vmatpush1.msra.mxu0 0.0
      %319 = vmatprep.subr.mxu0 0.0
      %320 = vmatpush1.msra.mxu0 0.0
      %321 = vmatprep.subr.mxu0 0.0
      %322 = vmatpush1.msra.mxu0 0.0
      %323 = vmatprep.subr.mxu0 0.0
      %324 = vmatpush1.msra.mxu0 0.0
      %325 = vmatprep.subr.mxu0 0.0
      %326 = vmatpush1.msra.mxu0 0.0
      %327 = vmatprep.subr.mxu0 0.0
      %328 = vmatpush1.msra.mxu0 0.0
      %329 = vmatprep.subr.mxu0 0.0
      %330 = vmatpush1.msra.mxu0 0.0
      %331 = vmatprep.subr.mxu0 0.0
      %332 = vmatpush1.msra.mxu0 0.0
      %333 = vmatprep.subr.mxu0 0.0
      %334 = vmatpush1.msra.mxu0 0.0
      %335 = vmatprep.subr.mxu0 0.0
      %336 = vmatpush1.msra.mxu0 0.0
      %337 = vmatprep.subr.mxu0 0.0
      %338 = vmatpush1.msra.mxu0 0.0
      %339 = vmatprep.subr.mxu0 0.0
      %340 = vmatpush1.msra.mxu0 0.0
      %341 = vmatprep.subr.mxu0 0.0
      %342 = vmatpush1.msra.mxu0 0.0
      %343 = vmatprep.subr.mxu0 0.0
      %344 = vmatpush1.msra.mxu0 0.0
      %345 = vmatprep.subr.mxu0 0.0
      %346 = vmatpush1.msra.mxu0 0.0
      %347 = vmatprep.subr.mxu0 0.0
      %348 = vmatpush1.msra.mxu0 0.0
      %349 = vmatprep.subr.mxu0 0.0
      %350 = vmatpush1.msra.mxu0 0.0
      %351 = vmatprep.subr.mxu0 0.0
      %352 = vmatpush1.msra.mxu0 0.0
      %353 = vmatprep.subr.mxu0 0.0
      %354 = vmatpush1.msra.mxu0 0.0
      %355 = vmatprep.subr.mxu0 0.0
      %356 = vmatpush1.msra.mxu0 0.0
      %357 = vmatprep.subr.mxu0 0.0
      %358 = vmatpush1.msra.mxu0 0.0
      %359 = vmatprep.subr.mxu0 0.0
      %360 = vmatpush1.msra.mxu0 0.0
      %361 = vmatprep.subr.mxu0 0.0
      %362 = vmatpush1.msra.mxu0 0.0
      %363 = vmatprep.subr.mxu0 0.0
      %364 = vmatpush1.msra.mxu0 0.0
      %365 = vmatprep.subr.mxu0 0.0
      %366 = vmatpush1.msra.mxu0 0.0
      %367 = vmatprep.subr.mxu0 0.0
      %368 = vmatpush1.msra.mxu0 0.0
      %369 = vmatprep.subr.mxu0 0.0
      %370 = vmatpush1.msra.mxu0 0.0
      %371 = vmatprep.subr.mxu0 0.0
      %372 = vmatpush1.msra.mxu0 0.0
      %373 = vmatprep.mubr.f32.mxu0 0.0
      %374 = vmatmul.mubr.f32.gmra.mrb[0].mxu0 %v307
      %v375 = vpop.f32.mrb[0].mxu0
      %v376 = vadd.f32 0.0, %v375
      %v377 = vpop.f32.mrb[0].mxu0
      %378 = vdwg.mxu0
      %v380 = vsel %vm305, %v295, 0
      %382 = vmatprep.subr.mxu0 0.0
      %383 = vmatpush1.msra.mxu0 %v296
      %384 = vmatprep.subr.mxu0 0.0
      %385 = vmatpush1.msra.mxu0 %v297
      %386 = vmatprep.subr.mxu0 0.0
      %387 = vmatpush1.msra.mxu0 %v298
      %388 = vmatprep.subr.mxu0 0.0
      %389 = vmatpush1.msra.mxu0 %v299
      %390 = vmatprep.subr.mxu0 0.0
      %391 = vmatpush1.msra.mxu0 0.0
      %392 = vmatprep.subr.mxu0 0.0
      %393 = vmatpush1.msra.mxu0 0.0
      %394 = vmatprep.subr.mxu0 0.0
      %395 = vmatpush1.msra.mxu0 0.0
      %396 = vmatprep.subr.mxu0 0.0
      %397 = vmatpush1.msra.mxu0 0.0
      %398 = vmatprep.subr.mxu0 0.0
      %399 = vmatpush1.msra.mxu0 0.0
      %400 = vmatprep.subr.mxu0 0.0
      %401 = vmatpush1.msra.mxu0 0.0
      %402 = vmatprep.subr.mxu0 0.0
      %403 = vmatpush1.msra.mxu0 0.0
      %404 = vmatprep.subr.mxu0 0.0
      %405 = vmatpush1.msra.mxu0 0.0
      %406 = vmatprep.subr.mxu0 0.0
      %407 = vmatpush1.msra.mxu0 0.0
      %408 = vmatprep.subr.mxu0 0.0
      %409 = vmatpush1.msra.mxu0 0.0
      %410 = vmatprep.subr.mxu0 0.0
      %411 = vmatpush1.msra.mxu0 0.0
      %412 = vmatprep.subr.mxu0 0.0
      %413 = vmatpush1.msra.mxu0 0.0
      %414 = vmatprep.subr.mxu0 0.0
      %415 = vmatpush1.msra.mxu0 0.0
      %416 = vmatprep.subr.mxu0 0.0
      %417 = vmatpush1.msra.mxu0 0.0
      %418 = vmatprep.subr.mxu0 0.0
      %419 = vmatpush1.msra.mxu0 0.0
      %420 = vmatprep.subr.mxu0 0.0
      %421 = vmatpush1.msra.mxu0 0.0
      %422 = vmatprep.subr.mxu0 0.0
      %423 = vmatpush1.msra.mxu0 0.0
      %424 = vmatprep.subr.mxu0 0.0
      %425 = vmatpush1.msra.mxu0 0.0
      %426 = vmatprep.subr.mxu0 0.0
      %427 = vmatpush1.msra.mxu0 0.0
      %428 = vmatprep.subr.mxu0 0.0
      %429 = vmatpush1.msra.mxu0 0.0
      %430 = vmatprep.subr.mxu0 0.0
      %431 = vmatpush1.msra.mxu0 0.0
      %432 = vmatprep.subr.mxu0 0.0
      %433 = vmatpush1.msra.mxu0 0.0
      %434 = vmatprep.subr.mxu0 0.0
      %435 = vmatpush1.msra.mxu0 0.0
      %436 = vmatprep.subr.mxu0 0.0
      %437 = vmatpush1.msra.mxu0 0.0
      %438 = vmatprep.subr.mxu0 0.0
      %439 = vmatpush1.msra.mxu0 0.0
      %440 = vmatprep.subr.mxu0 0.0
      %441 = vmatpush1.msra.mxu0 0.0
      %442 = vmatprep.subr.mxu0 0.0
      %443 = vmatpush1.msra.mxu0 0.0
      %444 = vmatprep.subr.mxu0 0.0
      %445 = vmatpush1.msra.mxu0 0.0
      %446 = vmatprep.mubr.f32.mxu0 0.0
      %447 = vmatmul.mubr.f32.gmra.mrb[0].mxu0 %v380
      %v448 = vpop.f32.mrb[0].mxu0
      %v449 = vadd.f32 %v376, %v448
      %v450 = vpop.f32.mrb[0].mxu0
      %451 = vdwg.mxu0
      %v452 = vld [vmem:[%s5] sm:$0x1]
      %v454 = vlaneseq
      %v455 = vshrl.u32 %v454, 7
      %v456 = vsub.s32 0, %v455
      %v457 = vrot.slane %v452, %v456
      %v459 = vadd.f32 %v449, %v457
      %v460 = vld [vmem:[#allocation3] sm:$0xff]
      %v461 = vxor.u32 %v459, 2147483648
      %v462 = vmul.f32 %v461, 1.442695
      %v463 = vpow.pop %v462
      %v464 = vadd.f32 %v463, 1.0
      %v465 = vrcp.pop %v464
      %v466 = vmul.f32 1.0, %v465
      %v467 = vtanh.pop %v459
      %469 = vrot.lane.b32.xlu0 %v460, 32
      %v470 = vpop.permute.xlu0 %469
      %v472 = vmul.f32 %v466, %v470
      %474 = vrot.lane.b32.xlu0 %v467, 64
      %v475 = vpop.permute.xlu0 %474
      %v477 = vmul.f32 %v466, %v475
      %479 = vrot.lane.b32.xlu0 %v477, 32
      %v480 = vpop.permute.xlu0 %479
      %v482 = vadd.f32 %v472, %v480
      %v483 = vtanh.pop %v482
      %485 = vrot.lane.b32.xlu0 %v483, 64
      %v486 = vpop.permute.xlu0 %485
      %v488 = vmul.f32 %v466, %v486
      %490 = vrot.lane.b32.xlu0 %v488, 32
      %v491 = vpop.permute.xlu0 %490
      %493 = vst.msk [vmem:[#allocation2] sm:$0xff] %vm305, %v491
      %495 = vrot.lane.b32.xlu0 %v482, 96
      %v496 = vpop.permute.xlu0 %495
      %498 = vst.msk [vmem:[#allocation3] sm:$0xff] %vm305, %v496
      %v499 = vld [vmem:[%s2] sm:$0xff]
      %v500 = vld [vmem:[%s2 + $0x8] sm:$0xff]
      %v501 = vld [vmem:[%s2 + $0x10] sm:$0xff]
      %v502 = vld [vmem:[%s2 + $0x18] sm:$0xff]
      %s503 = scalar_lea.vmem [#allocation2], 8
      %v504 = vld [vmem:[%s503] sm:$0xff]
      %v505 = vld [vmem:[%s4] sm:$0xff]
      %v506 = vld [vmem:[%s4 + $0x8] sm:$0xff]
      %v507 = vld [vmem:[%s4 + $0x10] sm:$0xff]
      %v508 = vld [vmem:[%s4 + $0x18] sm:$0xff]
      %v510 = vsel %vm305, %v504, 0
      %512 = vmatprep.subr.mxu0 0.0
      %513 = vmatpush1.msra.mxu0 %v505
      %514 = vmatprep.subr.mxu0 0.0
      %515 = vmatpush1.msra.mxu0 %v506
      %516 = vmatprep.subr.mxu0 0.0
      %517 = vmatpush1.msra.mxu0 %v507
      %518 = vmatprep.subr.mxu0 0.0
      %519 = vmatpush1.msra.mxu0 %v508
      %520 = vmatprep.subr.mxu0 0.0
      %521 = vmatpush1.msra.mxu0 0.0
      %522 = vmatprep.subr.mxu0 0.0
      %523 = vmatpush1.msra.mxu0 0.0
      %524 = vmatprep.subr.mxu0 0.0
      %525 = vmatpush1.msra.mxu0 0.0
      %526 = vmatprep.subr.mxu0 0.0
      %527 = vmatpush1.msra.mxu0 0.0
      %528 = vmatprep.subr.mxu0 0.0
      %529 = vmatpush1.msra.mxu0 0.0
      %530 = vmatprep.subr.mxu0 0.0
      %531 = vmatpush1.msra.mxu0 0.0
      %532 = vmatprep.subr.mxu0 0.0
      %533 = vmatpush1.msra.mxu0 0.0
      %534 = vmatprep.subr.mxu0 0.0
      %535 = vmatpush1.msra.mxu0 0.0
      %536 = vmatprep.subr.mxu0 0.0
      %537 = vmatpush1.msra.mxu0 0.0
      %538 = vmatprep.subr.mxu0 0.0
      %539 = vmatpush1.msra.mxu0 0.0
      %540 = vmatprep.subr.mxu0 0.0
      %541 = vmatpush1.msra.mxu0 0.0
      %542 = vmatprep.subr.mxu0 0.0
      %543 = vmatpush1.msra.mxu0 0.0
      %544 = vmatprep.subr.mxu0 0.0
      %545 = vmatpush1.msra.mxu0 0.0
      %546 = vmatprep.subr.mxu0 0.0
      %547 = vmatpush1.msra.mxu0 0.0
      %548 = vmatprep.subr.mxu0 0.0
      %549 = vmatpush1.msra.mxu0 0.0
      %550 = vmatprep.subr.mxu0 0.0
      %551 = vmatpush1.msra.mxu0 0.0
      %552 = vmatprep.subr.mxu0 0.0
      %553 = vmatpush1.msra.mxu0 0.0
      %554 = vmatprep.subr.mxu0 0.0
      %555 = vmatpush1.msra.mxu0 0.0
      %556 = vmatprep.subr.mxu0 0.0
      %557 = vmatpush1.msra.mxu0 0.0
      %558 = vmatprep.subr.mxu0 0.0
      %559 = vmatpush1.msra.mxu0 0.0
      %560 = vmatprep.subr.mxu0 0.0
      %561 = vmatpush1.msra.mxu0 0.0
      %562 = vmatprep.subr.mxu0 0.0
      %563 = vmatpush1.msra.mxu0 0.0
      %564 = vmatprep.subr.mxu0 0.0
      %565 = vmatpush1.msra.mxu0 0.0
      %566 = vmatprep.subr.mxu0 0.0
      %567 = vmatpush1.msra.mxu0 0.0
      %568 = vmatprep.subr.mxu0 0.0
      %569 = vmatpush1.msra.mxu0 0.0
      %570 = vmatprep.subr.mxu0 0.0
      %571 = vmatpush1.msra.mxu0 0.0
      %572 = vmatprep.subr.mxu0 0.0
      %573 = vmatpush1.msra.mxu0 0.0
      %574 = vmatprep.subr.mxu0 0.0
      %575 = vmatpush1.msra.mxu0 0.0
      %576 = vmatprep.mubr.f32.mxu0 0.0
      %577 = vmatmul.mubr.f32.gmra.mrb[0].mxu0 %v510
      %v578 = vpop.f32.mrb[0].mxu0
      %v579 = vadd.f32 0.0, %v578
      %v580 = vpop.f32.mrb[0].mxu0
      %581 = vdwg.mxu0
      %v582 = vsel %vm305, %v491, 0
      %584 = vmatprep.subr.mxu0 0.0
      %585 = vmatpush1.msra.mxu0 %v499
      %586 = vmatprep.subr.mxu0 0.0
      %587 = vmatpush1.msra.mxu0 %v500
      %588 = vmatprep.subr.mxu0 0.0
      %589 = vmatpush1.msra.mxu0 %v501
      %590 = vmatprep.subr.mxu0 0.0
      %591 = vmatpush1.msra.mxu0 %v502
      %592 = vmatprep.subr.mxu0 0.0
      %593 = vmatpush1.msra.mxu0 0.0
      %594 = vmatprep.subr.mxu0 0.0
      %595 = vmatpush1.msra.mxu0 0.0
      %596 = vmatprep.subr.mxu0 0.0
      %597 = vmatpush1.msra.mxu0 0.0
      %598 = vmatprep.subr.mxu0 0.0
      %599 = vmatpush1.msra.mxu0 0.0
      %600 = vmatprep.subr.mxu0 0.0
      %601 = vmatpush1.msra.mxu0 0.0
      %602 = vmatprep.subr.mxu0 0.0
      %603 = vmatpush1.msra.mxu0 0.0
      %604 = vmatprep.subr.mxu0 0.0
      %605 = vmatpush1.msra.mxu0 0.0
      %606 = vmatprep.subr.mxu0 0.0
      %607 = vmatpush1.msra.mxu0 0.0
      %608 = vmatprep.subr.mxu0 0.0
      %609 = vmatpush1.msra.mxu0 0.0
      %610 = vmatprep.subr.mxu0 0.0
      %611 = vmatpush1.msra.mxu0 0.0
      %612 = vmatprep.subr.mxu0 0.0
      %613 = vmatpush1.msra.mxu0 0.0
      %614 = vmatprep.subr.mxu0 0.0
      %615 = vmatpush1.msra.mxu0 0.0
      %616 = vmatprep.subr.mxu0 0.0
      %617 = vmatpush1.msra.mxu0 0.0
      %618 = vmatprep.subr.mxu0 0.0
      %619 = vmatpush1.msra.mxu0 0.0
      %620 = vmatprep.subr.mxu0 0.0
      %621 = vmatpush1.msra.mxu0 0.0
      %622 = vmatprep.subr.mxu0 0.0
      %623 = vmatpush1.msra.mxu0 0.0
      %624 = vmatprep.subr.mxu0 0.0
      %625 = vmatpush1.msra.mxu0 0.0
      %626 = vmatprep.subr.mxu0 0.0
      %627 = vmatpush1.msra.mxu0 0.0
      %628 = vmatprep.subr.mxu0 0.0
      %629 = vmatpush1.msra.mxu0 0.0
      %630 = vmatprep.subr.mxu0 0.0
      %631 = vmatpush1.msra.mxu0 0.0
      %632 = vmatprep.subr.mxu0 0.0
      %633 = vmatpush1.msra.mxu0 0.0
      %634 = vmatprep.subr.mxu0 0.0
      %635 = vmatpush1.msra.mxu0 0.0
      %636 = vmatprep.subr.mxu0 0.0
      %637 = vmatpush1.msra.mxu0 0.0
      %638 = vmatprep.subr.mxu0 0.0
      %639 = vmatpush1.msra.mxu0 0.0
      %640 = vmatprep.subr.mxu0 0.0
      %641 = vmatpush1.msra.mxu0 0.0
      %642 = vmatprep.subr.mxu0 0.0
      %643 = vmatpush1.msra.mxu0 0.0
      %644 = vmatprep.subr.mxu0 0.0
      %645 = vmatpush1.msra.mxu0 0.0
      %646 = vmatprep.subr.mxu0 0.0
      %647 = vmatpush1.msra.mxu0 0.0
      %648 = vmatprep.mubr.f32.mxu0 0.0
      %649 = vmatmul.mubr.f32.gmra.mrb[0].mxu0 %v582
      %v650 = vpop.f32.mrb[0].mxu0
      %v651 = vadd.f32 %v579, %v650
      %v652 = vpop.f32.mrb[0].mxu0
      %653 = vdwg.mxu0
      %v654 = vld [vmem:[%s6] sm:$0x1]
      %v656 = vlaneseq
      %v657 = vshrl.u32 %v656, 7
      %v658 = vsub.s32 0, %v657
      %v659 = vrot.slane %v654, %v658
      %v661 = vadd.f32 %v651, %v659
      %s662 = scalar_lea.vmem [#allocation3], 8
      %v663 = vld [vmem:[%s662] sm:$0xff]
      %v664 = vxor.u32 %v661, 2147483648
      %v665 = vmul.f32 %v664, 1.442695
      %v666 = vpow.pop %v665
      %v667 = vadd.f32 %v666, 1.0
      %v668 = vrcp.pop %v667
      %v669 = vmul.f32 1.0, %v668
      %v670 = vtanh.pop %v661
      %672 = vrot.lane.b32.xlu0 %v663, 32
      %v673 = vpop.permute.xlu0 %672
      %v675 = vmul.f32 %v669, %v673
      %677 = vrot.lane.b32.xlu0 %v670, 64
      %v678 = vpop.permute.xlu0 %677
      %v680 = vmul.f32 %v669, %v678
      %682 = vrot.lane.b32.xlu0 %v680, 32
      %v683 = vpop.permute.xlu0 %682
      %v685 = vadd.f32 %v675, %v683
      %v686 = vtanh.pop %v685
      %688 = vrot.lane.b32.xlu0 %v686, 64
      %v689 = vpop.permute.xlu0 %688
      %v691 = vmul.f32 %v669, %v689
      %693 = vrot.lane.b32.xlu0 %v691, 32
      %v694 = vpop.permute.xlu0 %693
      %696 = vst.msk [vmem:[%s503] sm:$0xff] %vm305, %v694
      %698 = vrot.lane.b32.xlu0 %v685, 96
      %v699 = vpop.permute.xlu0 %698
      %701 = vst.msk [vmem:[%s662] sm:$0xff] %vm305, %v699
      %p702 = scmp.eq.s32.totalorder %s20, 7
      // Predicated region
      $region53: #{_forward.2} parent=47 // pred_check
        %p703 = pneg %p702
      $region54: #{_forward.2} parent=47 // pred_check_branch
        %705 = sbr.rel (%p703) target = $region56
      $region55: #{_forward.2} parent=47 // pred_region
        %v706 = vld [vmem:[#allocation2] sm:$0xff]
        %v707 = vld [vmem:[#allocation2 + $0x8] sm:$0xff]
        %708 = vst.msk [vmem:[%s7] sm:$0xff] %vm305, %v706
        %709 = vst.msk [vmem:[%s7 + $0x8] sm:$0xff] %vm305, %v707
        %v710 = vld [vmem:[#allocation3] sm:$0xff]
        %v711 = vld [vmem:[#allocation3 + $0x8] sm:$0xff]
        %712 = vst.msk [vmem:[%s8] sm:$0xff] %vm305, %v710
        %713 = vst.msk [vmem:[%s8 + $0x8] sm:$0xff] %vm305, %v711
      $region56: #{_forward.2} parent=47 // pred_fallthru
        _
      // Predicated region
      $region57: #{_forward.2} parent=47 // pred_check
        %p714 = pneg %p185
      $region58: #{_forward.2} parent=47 // pred_check_branch
        %716 = sbr.rel (%p714) target = $region60
      $region59: #{_forward.2} parent=47 // pred_region
        _
      $region60: #{_forward.2} parent=47 // pred_fallthru
        _
      // Predicated region
      $region61: #{_forward.2} parent=47 // pred_check
        %p717 = pneg %p206
      $region62: #{_forward.2} parent=47 // pred_check_branch
        %719 = sbr.rel (%p717) target = $region64
      $region63: #{_forward.2} parent=47 // pred_region
        _
      $region64: #{_forward.2} parent=47 // pred_fallthru
        _
      // Predicated region
      $region65: #{_forward.2} parent=47 // pred_check
        %p720 = pneg %p185
      $region66: #{_forward.2} parent=47 // pred_check_branch
        %722 = sbr.rel (%p720) target = $region68
      $region67: #{_forward.2} parent=47 // pred_region
        _
      $region68: #{_forward.2} parent=47 // pred_fallthru
        _
      // Predicated region
      $region69: #{_forward.2} parent=47 // pred_check
        %p723 = pneg %p206
      $region70: #{_forward.2} parent=47 // pred_check_branch
        %725 = sbr.rel (%p723) target = $region72
      $region71: #{_forward.2} parent=47 // pred_region
        _
      $region72: #{_forward.2} parent=47 // pred_fallthru
        _
    $region48: #{_forward.2} parent=5 // pred_fallthru
      _
    %p726 = scmp.le.s32.totalorder 2, %s15
    // Predicated region
    $region73: #{_forward.2} parent=5 // pred_check
      %p727 = pneg %p726
    $region74: #{_forward.2} parent=5 // pred_check_branch
      %729 = sbr.rel (%p727) target = $region76
    $region75: #{_forward.2} parent=5 // pred_region
      %s730 = ssub.s32 %s15, 2
    $region76: #{_forward.2} parent=5 // pred_fallthru
      _
  $region6: #{_forward.2} parent=0 // loop_footer
    %s19 = sadd.s32 1, %s15
  $region7: #{_forward.2} parent=0 // loop_footer_branch
    %14 = sbr.rel target = $region3
  $region8: #{_forward.2} parent=0 // loop_exit
    _

// kernel: _forward.3
$region0: #{_forward.3}
  #allocation0 [shape = 'u32[]', space=smem, size = 0x4, offset = 0x4, fixed_abs, tag = 'smem constant byte address 0x4 - core index']
  #allocation1 [shape = 'u32[144,128]{1,0:T(1,128)}', space=vmem, size = 0x12000, scoped, tag = 'internal scratch']
  #allocation2 [shape = 'f32[2,8,32]{2,1,0:T(8,128)}', space=vmem, size = 0x2000, scoped, tag = 'scratch operand']
  #allocation3 [shape = 'f32[2,8,32]{2,1,0:T(8,128)}', space=vmem, size = 0x2000, scoped, tag = 'scratch operand']
  #allocation4 [shape = 'f32[8,32]{1,0:T(8,128)}', space=vmem, size = 0x1000, scoped, tag = 'scratch operand']
  %s0 = inlined_call_operand.vmem [shape: f32[8,32], index: 0, kind: input, shape index: {}]
  %s1 = inlined_call_operand.vmem [shape: f32[2,8,32], index: 1, kind: input, shape index: {}]
  %s2 = inlined_call_operand.vmem [shape: f32[2,8,32], index: 2, kind: input, shape index: {}]
  %s3 = inlined_call_operand.vmem [shape: f32[32,128], index: 3, kind: input, shape index: {}]
  %s4 = inlined_call_operand.vmem [shape: f32[32,128], index: 4, kind: input, shape index: {}]
  %s5 = inlined_call_operand.vmem [shape: f32[32,128], index: 5, kind: input, shape index: {}]
  %s6 = inlined_call_operand.vmem [shape: f32[32,128], index: 6, kind: input, shape index: {}]
  %s7 = inlined_call_operand.vmem [shape: f32[1,128], index: 7, kind: input, shape index: {}]
  %s8 = inlined_call_operand.vmem [shape: f32[1,128], index: 8, kind: input, shape index: {}]
  %s9 = inlined_call_operand.vmem [shape: f32[128,32], index: 9, kind: input, shape index: {}]
  %s10 = inlined_call_operand.vmem [shape: f32[32,128], index: 10, kind: input, shape index: {}]
  %s11 = inlined_call_operand.vmem [shape: f32[1,128], index: 11, kind: input, shape index: {}]
  %s12 = inlined_call_operand.hbm [shape: f32[5,8,128], index: 12, kind: output, shape index: {}]
  %s13 = sld [smem:[#allocation0]]
  $region85: #{_forward.3} parent=0
    _
  %s15 = ssub.s32 1, %s13
  %s16 = scalar_select 0, %s15, %s13
  $region1: #{_forward.3} parent=0
    #allocation5 [shape = 'u8[8192]{0}', space=vmem, size = 0x2000, scoped, tag = 'output window, operand 0']
    #allocation6 [shape = 's32[2]{0}', space=sflag, size = 0x8, scoped, tag = 'scoped memory for _forward.3']
    %17 = vsyncpa [#allocation6], 0
    %s18 = scalar_lea.sflag [#allocation6], 1
    %19 = vsyncpa %s18, 0
    loop: start=0, step=1, limit=7
    $region2: #{_forward.3} parent=1 // loop_pre_header
      _
    $region3: #{_forward.3} parent=1 // loop_header
      %s21 = sphi 0, %s25
      %p22 = scmp.ge.s32.totalorder %s21, 7
      %s29 = sphi 0, %s29
      %s31 = sphi 0, %s29
      %s32 = sphi 0, %s31
      %s46 = sphi 0, %s32
      %s50 = sphi 0, %s50
      %s52 = sphi 0, %s50
      %s53 = sphi 0, %s52
      %s67 = sphi 0, %s53
      %s71 = sphi 0, %s71
      %s73 = sphi 0, %s71
      %s74 = sphi 0, %s73
      %s88 = sphi 0, %s74
      %s92 = sphi 0, %s92
      %s94 = sphi 0, %s92
      %s95 = sphi 0, %s94
      %s109 = sphi 0, %s95
      %s113 = sphi 0, %s113
      %s115 = sphi 0, %s113
      %s116 = sphi 0, %s115
      %s130 = sphi 0, %s116
      %s134 = sphi 0, %s134
      %s136 = sphi 0, %s134
      %s137 = sphi 0, %s136
      %s151 = sphi 0, %s137
      %s155 = sphi 0, %s155
      %s157 = sphi 0, %s155
      %s158 = sphi 0, %s157
      %s172 = sphi 0, %s158
      %s176 = sphi 0, %s176
      %s178 = sphi 0, %s176
      %s179 = sphi 0, %s178
      %s193 = sphi 0, %s179
      %s197 = sphi 0, %s197
      %s199 = sphi 0, %s197
      %s200 = sphi 0, %s199
      %s214 = sphi 0, %s200
      %s218 = sphi 0, %s218
      %s220 = sphi 0, %s218
      %s221 = sphi 0, %s220
      %s235 = sphi 0, %s221
      %s239 = sphi 0, %s239
      %s241 = sphi 0, %s239
      %s242 = sphi 0, %s241
      %s256 = sphi 0, %s242
      %s260 = sphi 0, %s260
      %s262 = sphi 0, %s260
      %s263 = sphi 0, %s262
      %s277 = sphi 0, %s263
      %s283 = sphi 0, %s285
      %s286 = sphi 0, %s283
      %s287 = sphi 0, %s286
      %s303 = sphi 0, %s287
    $region4: #{_forward.3} parent=1 // loop_header_branch
      %24 = sbr.rel (%p22) target = $region8
    $region5: #{_forward.3} parent=1 // loop_body
      %s26 = ssub.s32 %s21, 1
      %s27 = ssub.s32 %s21, 2
      %s28 = sadd.s32 %s21, 1
      %s30 = sadd.s32 %s29, 1
      %p33 = scmp.eq.s32.totalorder %s21, 4
      %p34 = scmp.ne.s32.totalorder %s29, %s31
      %p35 = scmp.eq.s32.totalorder %s21, 0
      %p36 = por %p34, %p35
      %p37 = scmp.ne.s32.totalorder %s29, %s31
      %p38 = scmp.eq.s32.totalorder %s26, 4
      %p39 = por %p37, %p38
      %p40 = scmp.ne.s32.totalorder %s31, %s32
      %p41 = scmp.eq.s32.totalorder %s26, 0
      %p42 = por %p40, %p41
      %p43 = scmp.ne.s32.totalorder %s31, %s32
      %p44 = scmp.eq.s32.totalorder %s27, 4
      %p45 = por %p43, %p44
      %p47 = scmp.ne.s32.totalorder %s32, %s46
      %p48 = scmp.eq.s32.totalorder %s27, 0
      %p49 = por %p47, %p48
      %s51 = sadd.s32 %s50, 1
      %p54 = scmp.eq.s32.totalorder %s21, 4
      %p55 = scmp.ne.s32.totalorder %s50, %s52
      %p56 = scmp.eq.s32.totalorder %s21, 0
      %p57 = por %p55, %p56
      %p58 = scmp.ne.s32.totalorder %s50, %s52
      %p59 = scmp.eq.s32.totalorder %s26, 4
      %p60 = por %p58, %p59
      %p61 = scmp.ne.s32.totalorder %s52, %s53
      %p62 = scmp.eq.s32.totalorder %s26, 0
      %p63 = por %p61, %p62
      %p64 = scmp.ne.s32.totalorder %s52, %s53
      %p65 = scmp.eq.s32.totalorder %s27, 4
      %p66 = por %p64, %p65
      %p68 = scmp.ne.s32.totalorder %s53, %s67
      %p69 = scmp.eq.s32.totalorder %s27, 0
      %p70 = por %p68, %p69
      %s72 = sadd.s32 %s71, 1
      %p75 = scmp.eq.s32.totalorder %s21, 4
      %p76 = scmp.ne.s32.totalorder %s71, %s73
      %p77 = scmp.eq.s32.totalorder %s21, 0
      %p78 = por %p76, %p77
      %p79 = scmp.ne.s32.totalorder %s71, %s73
      %p80 = scmp.eq.s32.totalorder %s26, 4
      %p81 = por %p79, %p80
      %p82 = scmp.ne.s32.totalorder %s73, %s74
      %p83 = scmp.eq.s32.totalorder %s26, 0
      %p84 = por %p82, %p83
      %p85 = scmp.ne.s32.totalorder %s73, %s74
      %p86 = scmp.eq.s32.totalorder %s27, 4
      %p87 = por %p85, %p86
      %p89 = scmp.ne.s32.totalorder %s74, %s88
      %p90 = scmp.eq.s32.totalorder %s27, 0
      %p91 = por %p89, %p90
      %s93 = sadd.s32 %s92, 1
      %p96 = scmp.eq.s32.totalorder %s21, 4
      %p97 = scmp.ne.s32.totalorder %s92, %s94
      %p98 = scmp.eq.s32.totalorder %s21, 0
      %p99 = por %p97, %p98
      %p100 = scmp.ne.s32.totalorder %s92, %s94
      %p101 = scmp.eq.s32.totalorder %s26, 4
      %p102 = por %p100, %p101
      %p103 = scmp.ne.s32.totalorder %s94, %s95
      %p104 = scmp.eq.s32.totalorder %s26, 0
      %p105 = por %p103, %p104
      %p106 = scmp.ne.s32.totalorder %s94, %s95
      %p107 = scmp.eq.s32.totalorder %s27, 4
      %p108 = por %p106, %p107
      %p110 = scmp.ne.s32.totalorder %s95, %s109
      %p111 = scmp.eq.s32.totalorder %s27, 0
      %p112 = por %p110, %p111
      %s114 = sadd.s32 %s113, 1
      %p117 = scmp.eq.s32.totalorder %s21, 4
      %p118 = scmp.ne.s32.totalorder %s113, %s115
      %p119 = scmp.eq.s32.totalorder %s21, 0
      %p120 = por %p118, %p119
      %p121 = scmp.ne.s32.totalorder %s113, %s115
      %p122 = scmp.eq.s32.totalorder %s26, 4
      %p123 = por %p121, %p122
      %p124 = scmp.ne.s32.totalorder %s115, %s116
      %p125 = scmp.eq.s32.totalorder %s26, 0
      %p126 = por %p124, %p125
      %p127 = scmp.ne.s32.totalorder %s115, %s116
      %p128 = scmp.eq.s32.totalorder %s27, 4
      %p129 = por %p127, %p128
      %p131 = scmp.ne.s32.totalorder %s116, %s130
      %p132 = scmp.eq.s32.totalorder %s27, 0
      %p133 = por %p131, %p132
      %s135 = sadd.s32 %s134, 1
      %p138 = scmp.eq.s32.totalorder %s21, 4
      %p139 = scmp.ne.s32.totalorder %s134, %s136
      %p140 = scmp.eq.s32.totalorder %s21, 0
      %p141 = por %p139, %p140
      %p142 = scmp.ne.s32.totalorder %s134, %s136
      %p143 = scmp.eq.s32.totalorder %s26, 4
      %p144 = por %p142, %p143
      %p145 = scmp.ne.s32.totalorder %s136, %s137
      %p146 = scmp.eq.s32.totalorder %s26, 0
      %p147 = por %p145, %p146
      %p148 = scmp.ne.s32.totalorder %s136, %s137
      %p149 = scmp.eq.s32.totalorder %s27, 4
      %p150 = por %p148, %p149
      %p152 = scmp.ne.s32.totalorder %s137, %s151
      %p153 = scmp.eq.s32.totalorder %s27, 0
      %p154 = por %p152, %p153
      %s156 = sadd.s32 %s155, 1
      %p159 = scmp.eq.s32.totalorder %s21, 4
      %p160 = scmp.ne.s32.totalorder %s155, %s157
      %p161 = scmp.eq.s32.totalorder %s21, 0
      %p162 = por %p160, %p161
      %p163 = scmp.ne.s32.totalorder %s155, %s157
      %p164 = scmp.eq.s32.totalorder %s26, 4
      %p165 = por %p163, %p164
      %p166 = scmp.ne.s32.totalorder %s157, %s158
      %p167 = scmp.eq.s32.totalorder %s26, 0
      %p168 = por %p166, %p167
      %p169 = scmp.ne.s32.totalorder %s157, %s158
      %p170 = scmp.eq.s32.totalorder %s27, 4
      %p171 = por %p169, %p170
      %p173 = scmp.ne.s32.totalorder %s158, %s172
      %p174 = scmp.eq.s32.totalorder %s27, 0
      %p175 = por %p173, %p174
      %s177 = sadd.s32 %s176, 1
      %p180 = scmp.eq.s32.totalorder %s21, 4
      %p181 = scmp.ne.s32.totalorder %s176, %s178
      %p182 = scmp.eq.s32.totalorder %s21, 0
      %p183 = por %p181, %p182
      %p184 = scmp.ne.s32.totalorder %s176, %s178
      %p185 = scmp.eq.s32.totalorder %s26, 4
      %p186 = por %p184, %p185
      %p187 = scmp.ne.s32.totalorder %s178, %s179
      %p188 = scmp.eq.s32.totalorder %s26, 0
      %p189 = por %p187, %p188
      %p190 = scmp.ne.s32.totalorder %s178, %s179
      %p191 = scmp.eq.s32.totalorder %s27, 4
      %p192 = por %p190, %p191
      %p194 = scmp.ne.s32.totalorder %s179, %s193
      %p195 = scmp.eq.s32.totalorder %s27, 0
      %p196 = por %p194, %p195
      %s198 = sadd.s32 %s197, 1
      %p201 = scmp.eq.s32.totalorder %s21, 4
      %p202 = scmp.ne.s32.totalorder %s197, %s199
      %p203 = scmp.eq.s32.totalorder %s21, 0
      %p204 = por %p202, %p203
      %p205 = scmp.ne.s32.totalorder %s197, %s199
      %p206 = scmp.eq.s32.totalorder %s26, 4
      %p207 = por %p205, %p206
      %p208 = scmp.ne.s32.totalorder %s199, %s200
      %p209 = scmp.eq.s32.totalorder %s26, 0
      %p210 = por %p208, %p209
      %p211 = scmp.ne.s32.totalorder %s199, %s200
      %p212 = scmp.eq.s32.totalorder %s27, 4
      %p213 = por %p211, %p212
      %p215 = scmp.ne.s32.totalorder %s200, %s214
      %p216 = scmp.eq.s32.totalorder %s27, 0
      %p217 = por %p215, %p216
      %s219 = sadd.s32 %s218, 1
      %p222 = scmp.eq.s32.totalorder %s21, 4
      %p223 = scmp.ne.s32.totalorder %s218, %s220
      %p224 = scmp.eq.s32.totalorder %s21, 0
      %p225 = por %p223, %p224
      %p226 = scmp.ne.s32.totalorder %s218, %s220
      %p227 = scmp.eq.s32.totalorder %s26, 4
      %p228 = por %p226, %p227
      %p229 = scmp.ne.s32.totalorder %s220, %s221
      %p230 = scmp.eq.s32.totalorder %s26, 0
      %p231 = por %p229, %p230
      %p232 = scmp.ne.s32.totalorder %s220, %s221
      %p233 = scmp.eq.s32.totalorder %s27, 4
      %p234 = por %p232, %p233
      %p236 = scmp.ne.s32.totalorder %s221, %s235
      %p237 = scmp.eq.s32.totalorder %s27, 0
      %p238 = por %p236, %p237
      %s240 = sadd.s32 %s239, 1
      %p243 = scmp.eq.s32.totalorder %s21, 4
      %p244 = scmp.ne.s32.totalorder %s239, %s241
      %p245 = scmp.eq.s32.totalorder %s21, 0
      %p246 = por %p244, %p245
      %p247 = scmp.ne.s32.totalorder %s239, %s241
      %p248 = scmp.eq.s32.totalorder %s26, 4
      %p249 = por %p247, %p248
      %p250 = scmp.ne.s32.totalorder %s241, %s242
      %p251 = scmp.eq.s32.totalorder %s26, 0
      %p252 = por %p250, %p251
      %p253 = scmp.ne.s32.totalorder %s241, %s242
      %p254 = scmp.eq.s32.totalorder %s27, 4
      %p255 = por %p253, %p254
      %p257 = scmp.ne.s32.totalorder %s242, %s256
      %p258 = scmp.eq.s32.totalorder %s27, 0
      %p259 = por %p257, %p258
      %s261 = sadd.s32 %s260, 1
      %p264 = scmp.eq.s32.totalorder %s21, 4
      %p265 = scmp.ne.s32.totalorder %s260, %s262
      %p266 = scmp.eq.s32.totalorder %s21, 0
      %p267 = por %p265, %p266
      %p268 = scmp.ne.s32.totalorder %s260, %s262
      %p269 = scmp.eq.s32.totalorder %s26, 4
      %p270 = por %p268, %p269
      %p271 = scmp.ne.s32.totalorder %s262, %s263
      %p272 = scmp.eq.s32.totalorder %s26, 0
      %p273 = por %p271, %p272
      %p274 = scmp.ne.s32.totalorder %s262, %s263
      %p275 = scmp.eq.s32.totalorder %s27, 4
      %p276 = por %p274, %p275
      %p278 = scmp.ne.s32.totalorder %s263, %s277
      %p279 = scmp.eq.s32.totalorder %s27, 0
      %p280 = por %p278, %p279
      %s281 = ssub.s32 %s21, %s28
      %p282 = scmp.eq.s32.totalorder %s281, 0
      %s284 = sadd.s32 %s283, 1
      %s285 = scalar_select %p282, %s283, %s284
      %p288 = pneg %p282
      %p289 = scmp.eq.s32.totalorder %s21, 4
      %p290 = por %p288, %p289
      %p291 = scmp.ne.s32.totalorder %s283, %s286
      %p292 = scmp.eq.s32.totalorder %s21, 0
      %p293 = por %p291, %p292
      %p294 = scmp.ne.s32.totalorder %s283, %s286
      %p295 = scmp.eq.s32.totalorder %s26, 4
      %p296 = por %p294, %p295
      %p297 = scmp.ne.s32.totalorder %s286, %s287
      %p298 = scmp.eq.s32.totalorder %s26, 0
      %p299 = por %p297, %p298
      %p300 = scmp.ne.s32.totalorder %s286, %s287
      %p301 = scmp.eq.s32.totalorder %s27, 4
      %p302 = por %p300, %p301
      %p304 = scmp.ne.s32.totalorder %s287, %s303
      %p305 = scmp.eq.s32.totalorder %s27, 0
      %p306 = por %p304, %p305
      %p307 = scmp.le.s32.totalorder 1, %s21
      %p308 = scmp.lt.s32.totalorder %s21, 6
      %p309 = pnand %p307, %p308
      %p310 = pneg %p309
      // Predicated region
      $region9: #{_forward.3} parent=5 // pred_check
        _
      $region10: #{_forward.3} parent=5 // pred_check_branch
        %312 = sbr.rel (%p309) target = $region12
      $region11: #{_forward.3} parent=5 // pred_region
        %s313 = ssub.s32 %s21, 1
        // Predicated region
        $region13: #{_forward.3} parent=11 // pred_check
          %p314 = pneg %p42
        $region14: #{_forward.3} parent=11 // pred_check_branch
          %316 = sbr.rel (%p314) target = $region16
        $region15: #{_forward.3} parent=11 // pred_region
          _
        $region16: #{_forward.3} parent=11 // pred_fallthru
          _
        // Predicated region
        $region17: #{_forward.3} parent=11 // pred_check
          %p317 = pneg %p63
        $region18: #{_forward.3} parent=11 // pred_check_branch
          %319 = sbr.rel (%p317) target = $region20
        $region19: #{_forward.3} parent=11 // pred_region
          _
        $region20: #{_forward.3} parent=11 // pred_fallthru
          _
        // Predicated region
        $region21: #{_forward.3} parent=11 // pred_check
          %p320 = pneg %p84
        $region22: #{_forward.3} parent=11 // pred_check_branch
          %322 = sbr.rel (%p320) target = $region24
        $region23: #{_forward.3} parent=11 // pred_region
          _
        $region24: #{_forward.3} parent=11 // pred_fallthru
          _
        // Predicated region
        $region25: #{_forward.3} parent=11 // pred_check
          %p323 = pneg %p105
        $region26: #{_forward.3} parent=11 // pred_check_branch
          %325 = sbr.rel (%p323) target = $region28
        $region27: #{_forward.3} parent=11 // pred_region
          _
        $region28: #{_forward.3} parent=11 // pred_fallthru
          _
        // Predicated region
        $region29: #{_forward.3} parent=11 // pred_check
          %p326 = pneg %p126
        $region30: #{_forward.3} parent=11 // pred_check_branch
          %328 = sbr.rel (%p326) target = $region32
        $region31: #{_forward.3} parent=11 // pred_region
          _
        $region32: #{_forward.3} parent=11 // pred_fallthru
          _
        // Predicated region
        $region33: #{_forward.3} parent=11 // pred_check
          %p329 = pneg %p147
        $region34: #{_forward.3} parent=11 // pred_check_branch
          %331 = sbr.rel (%p329) target = $region36
        $region35: #{_forward.3} parent=11 // pred_region
          _
        $region36: #{_forward.3} parent=11 // pred_fallthru
          _
        // Predicated region
        $region37: #{_forward.3} parent=11 // pred_check
          %p332 = pneg %p168
        $region38: #{_forward.3} parent=11 // pred_check_branch
          %334 = sbr.rel (%p332) target = $region40
        $region39: #{_forward.3} parent=11 // pred_region
          _
        $region40: #{_forward.3} parent=11 // pred_fallthru
          _
        // Predicated region
        $region41: #{_forward.3} parent=11 // pred_check
          %p335 = pneg %p189
        $region42: #{_forward.3} parent=11 // pred_check_branch
          %337 = sbr.rel (%p335) target = $region44
        $region43: #{_forward.3} parent=11 // pred_region
          _
        $region44: #{_forward.3} parent=11 // pred_fallthru
          _
        // Predicated region
        $region45: #{_forward.3} parent=11 // pred_check
          %p338 = pneg %p210
        $region46: #{_forward.3} parent=11 // pred_check_branch
          %340 = sbr.rel (%p338) target = $region48
        $region47: #{_forward.3} parent=11 // pred_region
          _
        $region48: #{_forward.3} parent=11 // pred_fallthru
          _
        // Predicated region
        $region49: #{_forward.3} parent=11 // pred_check
          %p341 = pneg %p231
        $region50: #{_forward.3} parent=11 // pred_check_branch
          %343 = sbr.rel (%p341) target = $region52
        $region51: #{_forward.3} parent=11 // pred_region
          _
        $region52: #{_forward.3} parent=11 // pred_fallthru
          _
        // Predicated region
        $region53: #{_forward.3} parent=11 // pred_check
          %p344 = pneg %p252
        $region54: #{_forward.3} parent=11 // pred_check_branch
          %346 = sbr.rel (%p344) target = $region56
        $region55: #{_forward.3} parent=11 // pred_region
          _
        $region56: #{_forward.3} parent=11 // pred_fallthru
          _
        // Predicated region
        $region57: #{_forward.3} parent=11 // pred_check
          %p347 = pneg %p273
        $region58: #{_forward.3} parent=11 // pred_check_branch
          %349 = sbr.rel (%p347) target = $region60
        $region59: #{_forward.3} parent=11 // pred_region
          _
        $region60: #{_forward.3} parent=11 // pred_fallthru
          _
      $region12: #{_forward.3} parent=5 // pred_fallthru
        _
      %p350 = scmp.lt.s32.totalorder %s21, 5
      // Predicated region
      $region61: #{_forward.3} parent=5 // pred_check
        %p351 = pneg %p350
      $region62: #{_forward.3} parent=5 // pred_check_branch
        %353 = sbr.rel (%p351) target = $region64
      $region63: #{_forward.3} parent=5 // pred_region
        _
      $region64: #{_forward.3} parent=5 // pred_fallthru
        _
      %p354 = scmp.le.s32.totalorder 1, %s21
      %p355 = scmp.lt.s32.totalorder %s21, 6
      %p356 = pnand %p354, %p355
      %p357 = pneg %p356
      // Predicated region
      $region65: #{_forward.3} parent=5 // pred_check
        _
      $region66: #{_forward.3} parent=5 // pred_check_branch
        %359 = sbr.rel (%p356) target = $region68
      $region67: #{_forward.3} parent=5 // pred_region
        %s360 = ssub.s32 %s21, 1
        %p361 = pneg %p42
        %p362 = pneg %p39
        %p363 = pneg %p63
        %p364 = pneg %p60
        %p365 = pneg %p84
        %p366 = pneg %p81
        %p367 = pneg %p105
        %p368 = pneg %p102
        %p369 = pneg %p126
        %p370 = pneg %p123
        %p371 = pneg %p147
        %p372 = pneg %p144
        %p373 = pneg %p168
        %p374 = pneg %p165
        %p375 = pneg %p189
        %p376 = pneg %p186
        %p377 = pneg %p210
        %p378 = pneg %p207
        %p379 = pneg %p231
        %p380 = pneg %p228
        %p381 = pneg %p252
        %p382 = pneg %p249
        %p383 = pneg %p273
        %p384 = pneg %p270
        %p385 = pneg %p299
        %p386 = pneg %p296
        %s387 = sand.u32 %s286, 1
        %s388 = scalar_lea.sflag [#allocation6], %s387
        %s389 = sand.u32 %s286, 1
        %s390 = smul.addr %s389, 8
        %s391 = scalar_lea.vmem [#allocation5], %s390
        %p392 = scmp.eq.s32.totalorder %s26, 0
        // Predicated region
        $region69: #{_forward.3} parent=67 // pred_check
          %p393 = pneg %p392
        $region70: #{_forward.3} parent=67 // pred_check_branch
          %395 = sbr.rel (%p393) target = $region72
        $region71: #{_forward.3} parent=67 // pred_region
          %v396 = vld [vmem:[%s1] sm:$0xff]
          %v397 = vld [vmem:[%s1 + $0x8] sm:$0xff]
          %vm398 = vcmask 261120
          %399 = vst.msk [vmem:[#allocation2] sm:$0xff] %vm398, %v396
          %400 = vst.msk [vmem:[#allocation2 + $0x8] sm:$0xff] %vm398, %v397
          %v401 = vld [vmem:[%s2] sm:$0xff]
          %v402 = vld [vmem:[%s2 + $0x8] sm:$0xff]
          %403 = vst.msk [vmem:[#allocation3] sm:$0xff] %vm398, %v401
          %404 = vst.msk [vmem:[#allocation3 + $0x8] sm:$0xff] %vm398, %v402
          %v405 = vld [vmem:[%s0] sm:$0xff]
          %406 = vst.msk [vmem:[#allocation4] sm:$0xff] %vm398, %v405
        $region72: #{_forward.3} parent=67 // pred_fallthru
          _
        %v407 = vld [vmem:[#allocation4] sm:$0xff]
        %v408 = vld [vmem:[%s3] sm:$0xff]
        %v409 = vld [vmem:[%s3 + $0x8] sm:$0xff]
        %v410 = vld [vmem:[%s3 + $0x10] sm:$0xff]
        %v411 = vld [vmem:[%s3 + $0x18] sm:$0xff]
        %v412 = vld [vmem:[#allocation2] sm:$0xff]
        %v413 = vld [vmem:[%s5] sm:$0xff]
        %v414 = vld [vmem:[%s5 + $0x8] sm:$0xff]
        %v415 = vld [vmem:[%s5 + $0x10] sm:$0xff]
        %v416 = vld [vmem:[%s5 + $0x18] sm:$0xff]
        %vm417 = vcmask 261120
        %v419 = vsel %vm417, %v412, 0
        %421 = vmatprep.subr.mxu0 0.0
        %422 = vmatpush1.msra.mxu0 %v413
        %423 = vmatprep.subr.mxu0 0.0
        %424 = vmatpush1.msra.mxu0 %v414
        %425 = vmatprep.subr.mxu0 0.0
        %426 = vmatpush1.msra.mxu0 %v415
        %427 = vmatprep.subr.mxu0 0.0
        %428 = vmatpush1.msra.mxu0 %v416
        %429 = vmatprep.subr.mxu0 0.0
        %430 = vmatpush1.msra.mxu0 0.0
        %431 = vmatprep.subr.mxu0 0.0
        %432 = vmatpush1.msra.mxu0 0.0
        %433 = vmatprep.subr.mxu0 0.0
        %434 = vmatpush1.msra.mxu0 0.0
        %435 = vmatprep.subr.mxu0 0.0
        %436 = vmatpush1.msra.mxu0 0.0
        %437 = vmatprep.subr.mxu0 0.0
        %438 = vmatpush1.msra.mxu0 0.0
        %439 = vmatprep.subr.mxu0 0.0
        %440 = vmatpush1.msra.mxu0 0.0
        %441 = vmatprep.subr.mxu0 0.0
        %442 = vmatpush1.msra.mxu0 0.0
        %443 = vmatprep.subr.mxu0 0.0
        %444 = vmatpush1.msra.mxu0 0.0
        %445 = vmatprep.subr.mxu0 0.0
        %446 = vmatpush1.msra.mxu0 0.0
        %447 = vmatprep.subr.mxu0 0.0
        %448 = vmatpush1.msra.mxu0 0.0
        %449 = vmatprep.subr.mxu0 0.0
        %450 = vmatpush1.msra.mxu0 0.0
        %451 = vmatprep.subr.mxu0 0.0
        %452 = vmatpush1.msra.mxu0 0.0
        %453 = vmatprep.subr.mxu0 0.0
        %454 = vmatpush1.msra.mxu0 0.0
        %455 = vmatprep.subr.mxu0 0.0
        %456 = vmatpush1.msra.mxu0 0.0
        %457 = vmatprep.subr.mxu0 0.0
        %458 = vmatpush1.msra.mxu0 0.0
        %459 = vmatprep.subr.mxu0 0.0
        %460 = vmatpush1.msra.mxu0 0.0
        %461 = vmatprep.subr.mxu0 0.0
        %462 = vmatpush1.msra.mxu0 0.0
        %463 = vmatprep.subr.mxu0 0.0
        %464 = vmatpush1.msra.mxu0 0.0
        %465 = vmatprep.subr.mxu0 0.0
        %466 = vmatpush1.msra.mxu0 0.0
        %467 = vmatprep.subr.mxu0 0.0
        %468 = vmatpush1.msra.mxu0 0.0
        %469 = vmatprep.subr.mxu0 0.0
        %470 = vmatpush1.msra.mxu0 0.0
        %471 = vmatprep.subr.mxu0 0.0
        %472 = vmatpush1.msra.mxu0 0.0
        %473 = vmatprep.subr.mxu0 0.0
        %474 = vmatpush1.msra.mxu0 0.0
        %475 = vmatprep.subr.mxu0 0.0
        %476 = vmatpush1.msra.mxu0 0.0
        %477 = vmatprep.subr.mxu0 0.0
        %478 = vmatpush1.msra.mxu0 0.0
        %479 = vmatprep.subr.mxu0 0.0
        %480 = vmatpush1.msra.mxu0 0.0
        %481 = vmatprep.subr.mxu0 0.0
        %482 = vmatpush1.msra.mxu0 0.0
        %483 = vmatprep.subr.mxu0 0.0
        %484 = vmatpush1.msra.mxu0 0.0
        %485 = vmatprep.mubr.f32.mxu0 0.0
        %486 = vmatmul.mubr.f32.gmra.mrb[0].mxu0 %v419
        %v487 = vpop.f32.mrb[0].mxu0
        %v488 = vadd.f32 0.0, %v487
        %v489 = vpop.f32.mrb[0].mxu0
        %490 = vdwg.mxu0
        %v492 = vsel %vm417, %v407, 0
        %494 = vmatprep.subr.mxu0 0.0
        %495 = vmatpush1.msra.mxu0 %v408
        %496 = vmatprep.subr.mxu0 0.0
        %497 = vmatpush1.msra.mxu0 %v409
        %498 = vmatprep.subr.mxu0 0.0
        %499 = vmatpush1.msra.mxu0 %v410
        %500 = vmatprep.subr.mxu0 0.0
        %501 = vmatpush1.msra.mxu0 %v411
        %502 = vmatprep.subr.mxu0 0.0
        %503 = vmatpush1.msra.mxu0 0.0
        %504 = vmatprep.subr.mxu0 0.0
        %505 = vmatpush1.msra.mxu0 0.0
        %506 = vmatprep.subr.mxu0 0.0
        %507 = vmatpush1.msra.mxu0 0.0
        %508 = vmatprep.subr.mxu0 0.0
        %509 = vmatpush1.msra.mxu0 0.0
        %510 = vmatprep.subr.mxu0 0.0
        %511 = vmatpush1.msra.mxu0 0.0
        %512 = vmatprep.subr.mxu0 0.0
        %513 = vmatpush1.msra.mxu0 0.0
        %514 = vmatprep.subr.mxu0 0.0
        %515 = vmatpush1.msra.mxu0 0.0
        %516 = vmatprep.subr.mxu0 0.0
        %517 = vmatpush1.msra.mxu0 0.0
        %518 = vmatprep.subr.mxu0 0.0
        %519 = vmatpush1.msra.mxu0 0.0
        %520 = vmatprep.subr.mxu0 0.0
        %521 = vmatpush1.msra.mxu0 0.0
        %522 = vmatprep.subr.mxu0 0.0
        %523 = vmatpush1.msra.mxu0 0.0
        %524 = vmatprep.subr.mxu0 0.0
        %525 = vmatpush1.msra.mxu0 0.0
        %526 = vmatprep.subr.mxu0 0.0
        %527 = vmatpush1.msra.mxu0 0.0
        %528 = vmatprep.subr.mxu0 0.0
        %529 = vmatpush1.msra.mxu0 0.0
        %530 = vmatprep.subr.mxu0 0.0
        %531 = vmatpush1.msra.mxu0 0.0
        %532 = vmatprep.subr.mxu0 0.0
        %533 = vmatpush1.msra.mxu0 0.0
        %534 = vmatprep.subr.mxu0 0.0
        %535 = vmatpush1.msra.mxu0 0.0
        %536 = vmatprep.subr.mxu0 0.0
        %537 = vmatpush1.msra.mxu0 0.0
        %538 = vmatprep.subr.mxu0 0.0
        %539 = vmatpush1.msra.mxu0 0.0
        %540 = vmatprep.subr.mxu0 0.0
        %541 = vmatpush1.msra.mxu0 0.0
        %542 = vmatprep.subr.mxu0 0.0
        %543 = vmatpush1.msra.mxu0 0.0
        %544 = vmatprep.subr.mxu0 0.0
        %545 = vmatpush1.msra.mxu0 0.0
        %546 = vmatprep.subr.mxu0 0.0
        %547 = vmatpush1.msra.mxu0 0.0
        %548 = vmatprep.subr.mxu0 0.0
        %549 = vmatpush1.msra.mxu0 0.0
        %550 = vmatprep.subr.mxu0 0.0
        %551 = vmatpush1.msra.mxu0 0.0
        %552 = vmatprep.subr.mxu0 0.0
        %553 = vmatpush1.msra.mxu0 0.0
        %554 = vmatprep.subr.mxu0 0.0
        %555 = vmatpush1.msra.mxu0 0.0
        %556 = vmatprep.subr.mxu0 0.0
        %557 = vmatpush1.msra.mxu0 0.0
        %558 = vmatprep.mubr.f32.mxu0 0.0
        %559 = vmatmul.mubr.f32.gmra.mrb[0].mxu0 %v492
        %v560 = vpop.f32.mrb[0].mxu0
        %v561 = vadd.f32 %v488, %v560
        %v562 = vpop.f32.mrb[0].mxu0
        %563 = vdwg.mxu0
        %v564 = vld [vmem:[%s7] sm:$0x1]
        %v566 = vlaneseq
        %v567 = vshrl.u32 %v566, 7
        %v568 = vsub.s32 0, %v567
        %v569 = vrot.slane %v564, %v568
        %v571 = vadd.f32 %v561, %v569
        %v572 = vld [vmem:[#allocation3] sm:$0xff]
        %v573 = vxor.u32 %v571, 2147483648
        %v574 = vmul.f32 %v573, 1.442695
        %v575 = vpow.pop %v574
        %v576 = vadd.f32 %v575, 1.0
        %v577 = vrcp.pop %v576
        %v578 = vmul.f32 1.0, %v577
        %v579 = vtanh.pop %v571
        %581 = vrot.lane.b32.xlu0 %v572, 32
        %v582 = vpop.permute.xlu0 %581
        %v584 = vmul.f32 %v578, %v582
        %586 = vrot.lane.b32.xlu0 %v579, 64
        %v587 = vpop.permute.xlu0 %586
        %v589 = vmul.f32 %v578, %v587
        %591 = vrot.lane.b32.xlu0 %v589, 32
        %v592 = vpop.permute.xlu0 %591
        %v594 = vadd.f32 %v584, %v592
        %v595 = vtanh.pop %v594
        %597 = vrot.lane.b32.xlu0 %v595, 64
        %v598 = vpop.permute.xlu0 %597
        %v600 = vmul.f32 %v578, %v598
        %602 = vrot.lane.b32.xlu0 %v600, 32
        %v603 = vpop.permute.xlu0 %602
        %605 = vst.msk [vmem:[#allocation2] sm:$0xff] %vm417, %v603
        %607 = vrot.lane.b32.xlu0 %v594, 96
        %v608 = vpop.permute.xlu0 %607
        %610 = vst.msk [vmem:[#allocation3] sm:$0xff] %vm417, %v608
        %v611 = vld [vmem:[%s4] sm:$0xff]
        %v612 = vld [vmem:[%s4 + $0x8] sm:$0xff]
        %v613 = vld [vmem:[%s4 + $0x10] sm:$0xff]
        %v614 = vld [vmem:[%s4 + $0x18] sm:$0xff]
        %s615 = scalar_lea.vmem [#allocation2], 8
        %v616 = vld [vmem:[%s615] sm:$0xff]
        %v617 = vld [vmem:[%s6] sm:$0xff]
        %v618 = vld [vmem:[%s6 + $0x8] sm:$0xff]
        %v619 = vld [vmem:[%s6 + $0x10] sm:$0xff]
        %v620 = vld [vmem:[%s6 + $0x18] sm:$0xff]
        %v622 = vsel %vm417, %v616, 0
        %624 = vmatprep.subr.mxu0 0.0
        %625 = vmatpush1.msra.mxu0 %v617
        %626 = vmatprep.subr.mxu0 0.0
        %627 = vmatpush1.msra.mxu0 %v618
        %628 = vmatprep.subr.mxu0 0.0
        %629 = vmatpush1.msra.mxu0 %v619
        %630 = vmatprep.subr.mxu0 0.0
        %631 = vmatpush1.msra.mxu0 %v620
        %632 = vmatprep.subr.mxu0 0.0
        %633 = vmatpush1.msra.mxu0 0.0
        %634 = vmatprep.subr.mxu0 0.0
        %635 = vmatpush1.msra.mxu0 0.0
        %636 = vmatprep.subr.mxu0 0.0
        %637 = vmatpush1.msra.mxu0 0.0
        %638 = vmatprep.subr.mxu0 0.0
        %639 = vmatpush1.msra.mxu0 0.0
        %640 = vmatprep.subr.mxu0 0.0
        %641 = vmatpush1.msra.mxu0 0.0
        %642 = vmatprep.subr.mxu0 0.0
        %643 = vmatpush1.msra.mxu0 0.0
        %644 = vmatprep.subr.mxu0 0.0
        %645 = vmatpush1.msra.mxu0 0.0
        %646 = vmatprep.subr.mxu0 0.0
        %647 = vmatpush1.msra.mxu0 0.0
        %648 = vmatprep.subr.mxu0 0.0
        %649 = vmatpush1.msra.mxu0 0.0
        %650 = vmatprep.subr.mxu0 0.0
        %651 = vmatpush1.msra.mxu0 0.0
        %652 = vmatprep.subr.mxu0 0.0
        %653 = vmatpush1.msra.mxu0 0.0
        %654 = vmatprep.subr.mxu0 0.0
        %655 = vmatpush1.msra.mxu0 0.0
        %656 = vmatprep.subr.mxu0 0.0
        %657 = vmatpush1.msra.mxu0 0.0
        %658 = vmatprep.subr.mxu0 0.0
        %659 = vmatpush1.msra.mxu0 0.0
        %660 = vmatprep.subr.mxu0 0.0
        %661 = vmatpush1.msra.mxu0 0.0
        %662 = vmatprep.subr.mxu0 0.0
        %663 = vmatpush1.msra.mxu0 0.0
        %664 = vmatprep.subr.mxu0 0.0
        %665 = vmatpush1.msra.mxu0 0.0
        %666 = vmatprep.subr.mxu0 0.0
        %667 = vmatpush1.msra.mxu0 0.0
        %668 = vmatprep.subr.mxu0 0.0
        %669 = vmatpush1.msra.mxu0 0.0
        %670 = vmatprep.subr.mxu0 0.0
        %671 = vmatpush1.msra.mxu0 0.0
        %672 = vmatprep.subr.mxu0 0.0
        %673 = vmatpush1.msra.mxu0 0.0
        %674 = vmatprep.subr.mxu0 0.0
        %675 = vmatpush1.msra.mxu0 0.0
        %676 = vmatprep.subr.mxu0 0.0
        %677 = vmatpush1.msra.mxu0 0.0
        %678 = vmatprep.subr.mxu0 0.0
        %679 = vmatpush1.msra.mxu0 0.0
        %680 = vmatprep.subr.mxu0 0.0
        %681 = vmatpush1.msra.mxu0 0.0
        %682 = vmatprep.subr.mxu0 0.0
        %683 = vmatpush1.msra.mxu0 0.0
        %684 = vmatprep.subr.mxu0 0.0
        %685 = vmatpush1.msra.mxu0 0.0
        %686 = vmatprep.subr.mxu0 0.0
        %687 = vmatpush1.msra.mxu0 0.0
        %688 = vmatprep.mubr.f32.mxu0 0.0
        %689 = vmatmul.mubr.f32.gmra.mrb[0].mxu0 %v622
        %v690 = vpop.f32.mrb[0].mxu0
        %v691 = vadd.f32 0.0, %v690
        %v692 = vpop.f32.mrb[0].mxu0
        %693 = vdwg.mxu0
        %v694 = vsel %vm417, %v603, 0
        %696 = vmatprep.subr.mxu0 0.0
        %697 = vmatpush1.msra.mxu0 %v611
        %698 = vmatprep.subr.mxu0 0.0
        %699 = vmatpush1.msra.mxu0 %v612
        %700 = vmatprep.subr.mxu0 0.0
        %701 = vmatpush1.msra.mxu0 %v613
        %702 = vmatprep.subr.mxu0 0.0
        %703 = vmatpush1.msra.mxu0 %v614
        %704 = vmatprep.subr.mxu0 0.0
        %705 = vmatpush1.msra.mxu0 0.0
        %706 = vmatprep.subr.mxu0 0.0
        %707 = vmatpush1.msra.mxu0 0.0
        %708 = vmatprep.subr.mxu0 0.0
        %709 = vmatpush1.msra.mxu0 0.0
        %710 = vmatprep.subr.mxu0 0.0
        %711 = vmatpush1.msra.mxu0 0.0
        %712 = vmatprep.subr.mxu0 0.0
        %713 = vmatpush1.msra.mxu0 0.0
        %714 = vmatprep.subr.mxu0 0.0
        %715 = vmatpush1.msra.mxu0 0.0
        %716 = vmatprep.subr.mxu0 0.0
        %717 = vmatpush1.msra.mxu0 0.0
        %718 = vmatprep.subr.mxu0 0.0
        %719 = vmatpush1.msra.mxu0 0.0
        %720 = vmatprep.subr.mxu0 0.0
        %721 = vmatpush1.msra.mxu0 0.0
        %722 = vmatprep.subr.mxu0 0.0
        %723 = vmatpush1.msra.mxu0 0.0
        %724 = vmatprep.subr.mxu0 0.0
        %725 = vmatpush1.msra.mxu0 0.0
        %726 = vmatprep.subr.mxu0 0.0
        %727 = vmatpush1.msra.mxu0 0.0
        %728 = vmatprep.subr.mxu0 0.0
        %729 = vmatpush1.msra.mxu0 0.0
        %730 = vmatprep.subr.mxu0 0.0
        %731 = vmatpush1.msra.mxu0 0.0
        %732 = vmatprep.subr.mxu0 0.0
        %733 = vmatpush1.msra.mxu0 0.0
        %734 = vmatprep.subr.mxu0 0.0
        %735 = vmatpush1.msra.mxu0 0.0
        %736 = vmatprep.subr.mxu0 0.0
        %737 = vmatpush1.msra.mxu0 0.0
        %738 = vmatprep.subr.mxu0 0.0
        %739 = vmatpush1.msra.mxu0 0.0
        %740 = vmatprep.subr.mxu0 0.0
        %741 = vmatpush1.msra.mxu0 0.0
        %742 = vmatprep.subr.mxu0 0.0
        %743 = vmatpush1.msra.mxu0 0.0
        %744 = vmatprep.subr.mxu0 0.0
        %745 = vmatpush1.msra.mxu0 0.0
        %746 = vmatprep.subr.mxu0 0.0
        %747 = vmatpush1.msra.mxu0 0.0
        %748 = vmatprep.subr.mxu0 0.0
        %749 = vmatpush1.msra.mxu0 0.0
        %750 = vmatprep.subr.mxu0 0.0
        %751 = vmatpush1.msra.mxu0 0.0
        %752 = vmatprep.subr.mxu0 0.0
        %753 = vmatpush1.msra.mxu0 0.0
        %754 = vmatprep.subr.mxu0 0.0
        %755 = vmatpush1.msra.mxu0 0.0
        %756 = vmatprep.subr.mxu0 0.0
        %757 = vmatpush1.msra.mxu0 0.0
        %758 = vmatprep.subr.mxu0 0.0
        %759 = vmatpush1.msra.mxu0 0.0
        %760 = vmatprep.mubr.f32.mxu0 0.0
        %761 = vmatmul.mubr.f32.gmra.mrb[0].mxu0 %v694
        %v762 = vpop.f32.mrb[0].mxu0
        %v763 = vadd.f32 %v691, %v762
        %v764 = vpop.f32.mrb[0].mxu0
        %765 = vdwg.mxu0
        %v766 = vld [vmem:[%s8] sm:$0x1]
        %v768 = vlaneseq
        %v769 = vshrl.u32 %v768, 7
        %v770 = vsub.s32 0, %v769
        %v771 = vrot.slane %v766, %v770
        %v773 = vadd.f32 %v763, %v771
        %s774 = scalar_lea.vmem [#allocation3], 8
        %v775 = vld [vmem:[%s774] sm:$0xff]
        %v776 = vxor.u32 %v773, 2147483648
        %v777 = vmul.f32 %v776, 1.442695
        %v778 = vpow.pop %v777
        %v779 = vadd.f32 %v778, 1.0
        %v780 = vrcp.pop %v779
        %v781 = vmul.f32 1.0, %v780
        %v782 = vtanh.pop %v773
        %784 = vrot.lane.b32.xlu0 %v775, 32
        %v785 = vpop.permute.xlu0 %784
        %v787 = vmul.f32 %v781, %v785
        %789 = vrot.lane.b32.xlu0 %v782, 64
        %v790 = vpop.permute.xlu0 %789
        %v792 = vmul.f32 %v781, %v790
        %794 = vrot.lane.b32.xlu0 %v792, 32
        %v795 = vpop.permute.xlu0 %794
        %v797 = vadd.f32 %v787, %v795
        %v798 = vtanh.pop %v797
        %800 = vrot.lane.b32.xlu0 %v798, 64
        %v801 = vpop.permute.xlu0 %800
        %v803 = vmul.f32 %v781, %v801
        %805 = vrot.lane.b32.xlu0 %v803, 32
        %v806 = vpop.permute.xlu0 %805
        %808 = vst.msk [vmem:[%s615] sm:$0xff] %vm417, %v806
        %810 = vrot.lane.b32.xlu0 %v797, 96
        %v811 = vpop.permute.xlu0 %810
        %813 = vst.msk [vmem:[%s774] sm:$0xff] %vm417, %v811
        %v814 = vld [vmem:[%s10] sm:$0xff]
        %v815 = vld [vmem:[%s10 + $0x8] sm:$0xff]
        %v816 = vld [vmem:[%s10 + $0x10] sm:$0xff]
        %v817 = vld [vmem:[%s10 + $0x18] sm:$0xff]
        %v818 = vld [vmem:[%s11] sm:$0x1]
        %v820 = vlaneseq
        %v821 = vshrl.u32 %v820, 7
        %v822 = vsub.s32 0, %v821
        %v823 = vrot.slane %v818, %v822
        %v825 = vsel %vm417, %v806, 0
        %827 = vmatprep.subr.mxu0 0.0
        %828 = vmatpush1.msra.mxu0 %v814
        %829 = vmatprep.subr.mxu0 0.0
        %830 = vmatpush1.msra.mxu0 %v815
        %831 = vmatprep.subr.mxu0 0.0
        %832 = vmatpush1.msra.mxu0 %v816
        %833 = vmatprep.subr.mxu0 0.0
        %834 = vmatpush1.msra.mxu0 %v817
        %835 = vmatprep.subr.mxu0 0.0
        %836 = vmatpush1.msra.mxu0 0.0
        %837 = vmatprep.subr.mxu0 0.0
        %838 = vmatpush1.msra.mxu0 0.0
        %839 = vmatprep.subr.mxu0 0.0
        %840 = vmatpush1.msra.mxu0 0.0
        %841 = vmatprep.subr.mxu0 0.0
        %842 = vmatpush1.msra.mxu0 0.0
        %843 = vmatprep.subr.mxu0 0.0
        %844 = vmatpush1.msra.mxu0 0.0
        %845 = vmatprep.subr.mxu0 0.0
        %846 = vmatpush1.msra.mxu0 0.0
        %847 = vmatprep.subr.mxu0 0.0
        %848 = vmatpush1.msra.mxu0 0.0
        %849 = vmatprep.subr.mxu0 0.0
        %850 = vmatpush1.msra.mxu0 0.0
        %851 = vmatprep.subr.mxu0 0.0
        %852 = vmatpush1.msra.mxu0 0.0
        %853 = vmatprep.subr.mxu0 0.0
        %854 = vmatpush1.msra.mxu0 0.0
        %855 = vmatprep.subr.mxu0 0.0
        %856 = vmatpush1.msra.mxu0 0.0
        %857 = vmatprep.subr.mxu0 0.0
        %858 = vmatpush1.msra.mxu0 0.0
        %859 = vmatprep.subr.mxu0 0.0
        %860 = vmatpush1.msra.mxu0 0.0
        %861 = vmatprep.subr.mxu0 0.0
        %862 = vmatpush1.msra.mxu0 0.0
        %863 = vmatprep.subr.mxu0 0.0
        %864 = vmatpush1.msra.mxu0 0.0
        %865 = vmatprep.subr.mxu0 0.0
        %866 = vmatpush1.msra.mxu0 0.0
        %867 = vmatprep.subr.mxu0 0.0
        %868 = vmatpush1.msra.mxu0 0.0
        %869 = vmatprep.subr.mxu0 0.0
        %870 = vmatpush1.msra.mxu0 0.0
        %871 = vmatprep.subr.mxu0 0.0
        %872 = vmatpush1.msra.mxu0 0.0
        %873 = vmatprep.subr.mxu0 0.0
        %874 = vmatpush1.msra.mxu0 0.0
        %875 = vmatprep.subr.mxu0 0.0
        %876 = vmatpush1.msra.mxu0 0.0
        %877 = vmatprep.subr.mxu0 0.0
        %878 = vmatpush1.msra.mxu0 0.0
        %879 = vmatprep.subr.mxu0 0.0
        %880 = vmatpush1.msra.mxu0 0.0
        %881 = vmatprep.subr.mxu0 0.0
        %882 = vmatpush1.msra.mxu0 0.0
        %883 = vmatprep.subr.mxu0 0.0
        %884 = vmatpush1.msra.mxu0 0.0
        %885 = vmatprep.subr.mxu0 0.0
        %886 = vmatpush1.msra.mxu0 0.0
        %887 = vmatprep.subr.mxu0 0.0
        %888 = vmatpush1.msra.mxu0 0.0
        %889 = vmatprep.subr.mxu0 0.0
        %890 = vmatpush1.msra.mxu0 0.0
        %891 = vmatprep.mubr.f32.mxu0 0.0
        %892 = vmatmul.mubr.f32.gmra.mrb[0].mxu0 %v825
        %v893 = vpop.f32.mrb[0].mxu0
        %v894 = vadd.f32 %v823, %v893
        %v895 = vpop.f32.mrb[0].mxu0
        %896 = vdwg.mxu0
        %897 = vst [vmem:[%s391] sm:$0xff] %v894
        %898 = vmax.xlane.f32.xlu0 %v894
        %v899 = vpop.xlane.xlu0 %898
        %v900 = vlaneseq
        %v901 = vand.u32 %v900, 127
        %v902 = vcvt.s32.f32 %v901
        %vm903 = vcmp.eq.f32.partialorder %v894, %v899
        %v904 = vsel %vm903, %v902, 128.0
        %905 = vmin.xlane.f32.xlu0 %v904
        %v906 = vpop.xlane.xlu0 %905
        %vm907 = vcmp.eq.f32.partialorder %v902, %v906
        %v908 = vsel %vm907, 1, 0
        %v909 = vcvt.s32.f32 %v908
        %v910 = vld [vmem:[%s9] sm:$0xff]
        %v911 = vld [vmem:[%s9 + $0x8] sm:$0xff]
        %v912 = vld [vmem:[%s9 + $0x10] sm:$0xff]
        %v913 = vld [vmem:[%s9 + $0x18] sm:$0xff]
        %v914 = vld [vmem:[%s9 + $0x20] sm:$0xff]
        %v915 = vld [vmem:[%s9 + $0x28] sm:$0xff]
        %v916 = vld [vmem:[%s9 + $0x30] sm:$0xff]
        %v917 = vld [vmem:[%s9 + $0x38] sm:$0xff]
        %v918 = vld [vmem:[%s9 + $0x40] sm:$0xff]
        %v919 = vld [vmem:[%s9 + $0x48] sm:$0xff]
        %v920 = vld [vmem:[%s9 + $0x50] sm:$0xff]
        %v921 = vld [vmem:[%s9 + $0x58] sm:$0xff]
        %v922 = vld [vmem:[%s9 + $0x60] sm:$0xff]
        %v923 = vld [vmem:[%s9 + $0x68] sm:$0xff]
        %v924 = vld [vmem:[%s9 + $0x70] sm:$0xff]
        %v925 = vld [vmem:[%s9 + $0x78] sm:$0xff]
        %926 = vmatprep.subr.mxu0 0.0
        %927 = vmatpush1.msra.mxu0 %v910
        %928 = vmatprep.subr.mxu0 0.0
        %929 = vmatpush1.msra.mxu0 %v911
        %930 = vmatprep.subr.mxu0 0.0
        %931 = vmatpush1.msra.mxu0 %v912
        %932 = vmatprep.subr.mxu0 0.0
        %933 = vmatpush1.msra.mxu0 %v913
        %934 = vmatprep.subr.mxu0 0.0
        %935 = vmatpush1.msra.mxu0 %v914
        %936 = vmatprep.subr.mxu0 0.0
        %937 = vmatpush1.msra.mxu0 %v915
        %938 = vmatprep.subr.mxu0 0.0
        %939 = vmatpush1.msra.mxu0 %v916
        %940 = vmatprep.subr.mxu0 0.0
        %941 = vmatpush1.msra.mxu0 %v917
        %942 = vmatprep.subr.mxu0 0.0
        %943 = vmatpush1.msra.mxu0 %v918
        %944 = vmatprep.subr.mxu0 0.0
        %945 = vmatpush1.msra.mxu0 %v919
        %946 = vmatprep.subr.mxu0 0.0
        %947 = vmatpush1.msra.mxu0 %v920
        %948 = vmatprep.subr.mxu0 0.0
        %949 = vmatpush1.msra.mxu0 %v921
        %950 = vmatprep.subr.mxu0 0.0
        %951 = vmatpush1.msra.mxu0 %v922
        %952 = vmatprep.subr.mxu0 0.0
        %953 = vmatpush1.msra.mxu0 %v923
        %954 = vmatprep.subr.mxu0 0.0
        %955 = vmatpush1.msra.mxu0 %v924
        %956 = vmatprep.subr.mxu0 0.0
        %957 = vmatpush1.msra.mxu0 %v925
        %958 = vmatprep.subr.mxu0 0.0
        %959 = vmatpush1.msra.mxu0 0.0
        %960 = vmatprep.subr.mxu0 0.0
        %961 = vmatpush1.msra.mxu0 0.0
        %962 = vmatprep.subr.mxu0 0.0
        %963 = vmatpush1.msra.mxu0 0.0
        %964 = vmatprep.subr.mxu0 0.0
        %965 = vmatpush1.msra.mxu0 0.0
        %966 = vmatprep.subr.mxu0 0.0
        %967 = vmatpush1.msra.mxu0 0.0
        %968 = vmatprep.subr.mxu0 0.0
        %969 = vmatpush1.msra.mxu0 0.0
        %970 = vmatprep.subr.mxu0 0.0
        %971 = vmatpush1.msra.mxu0 0.0
        %972 = vmatprep.subr.mxu0 0.0
        %973 = vmatpush1.msra.mxu0 0.0
        %974 = vmatprep.subr.mxu0 0.0
        %975 = vmatpush1.msra.mxu0 0.0
        %976 = vmatprep.subr.mxu0 0.0
        %977 = vmatpush1.msra.mxu0 0.0
        %978 = vmatprep.subr.mxu0 0.0
        %979 = vmatpush1.msra.mxu0 0.0
        %980 = vmatprep.subr.mxu0 0.0
        %981 = vmatpush1.msra.mxu0 0.0
        %982 = vmatprep.subr.mxu0 0.0
        %983 = vmatpush1.msra.mxu0 0.0
        %984 = vmatprep.subr.mxu0 0.0
        %985 = vmatpush1.msra.mxu0 0.0
        %986 = vmatprep.subr.mxu0 0.0
        %987 = vmatpush1.msra.mxu0 0.0
        %988 = vmatprep.subr.mxu0 0.0
        %989 = vmatpush1.msra.mxu0 0.0
        %990 = vmatprep.mubr.f32.mxu0 0.0
        %991 = vmatmul.mubr.f32.gmra.mrb[0].mxu0 %v909
        %v992 = vpop.f32.mrb[0].mxu0
        %v993 = vadd.f32 0.0, %v992
        %v994 = vpop.f32.mrb[0].mxu0
        %995 = vdwg.mxu0
        %996 = vst.msk [vmem:[#allocation4] sm:$0xff] %vm417, %v993
        %s997 = sand.u32 %s286, 1
        %s998 = scalar_lea.sflag [#allocation6], %s997
        %s999 = sand.u32 %s286, 1
        %s1000 = smul.addr %s999, 8
        %s1001 = scalar_lea.vmem [#allocation5], %s1000
        // Predicated region
        $region73: #{_forward.3} parent=67 // pred_check
          %p1002 = pneg %p296
        $region74: #{_forward.3} parent=67 // pred_check_branch
          %1004 = sbr.rel (%p1002) target = $region76
        $region75: #{_forward.3} parent=67 // pred_region
          %s1006 = ssub.s32 128, 128
          %1007 = vsyncadd %s998, %s1006
          %s1008 = smul.addr %s26, 128
          %s1009 = scalar_lea.hbm %s12, %s1008
          %s1011 = sshll.u32 %s1001, 4
          %s1012 = int_to_ptr.vmem [resolvable:$true] %s1011
          %1014 = dma.vmem_to_hbm [thread:$0]  %s1012, 128, %s1009, %s998
        $region76: #{_forward.3} parent=67 // pred_fallthru
          _
      $region68: #{_forward.3} parent=5 // pred_fallthru
        _
      %p1015 = scmp.le.s32.totalorder 2, %s21
      // Predicated region
      $region77: #{_forward.3} parent=5 // pred_check
        %p1016 = pneg %p1015
      $region78: #{_forward.3} parent=5 // pred_check_branch
        %1018 = sbr.rel (%p1016) target = $region80
      $region79: #{_forward.3} parent=5 // pred_region
        %s1019 = ssub.s32 %s21, 2
        // Predicated region
        $region81: #{_forward.3} parent=79 // pred_check
          %p1020 = pneg %p302
        $region82: #{_forward.3} parent=79 // pred_check_branch
          %1022 = sbr.rel (%p1020) target = $region84
        $region83: #{_forward.3} parent=79 // pred_region
          %s1023 = sand.u32 %s287, 1
          %s1024 = scalar_lea.sflag [#allocation6], %s1023
          %s1025 = sand.u32 %s287, 1
          %s1026 = smul.addr %s1025, 8
          %s1027 = scalar_lea.vmem [#allocation5], %s1026
          %1028 = dma.done %s1024, 128
        $region84: #{_forward.3} parent=79 // pred_fallthru
          _
      $region80: #{_forward.3} parent=5 // pred_fallthru
        _
    $region6: #{_forward.3} parent=1 // loop_footer
      %s25 = sadd.s32 1, %s21
    $region7: #{_forward.3} parent=1 // loop_footer_branch
      %20 = sbr.rel target = $region3
    $region8: #{_forward.3} parent=1 // loop_exit
      _
    %1029 = vsyncpa [#allocation6], 1
    %s1030 = scalar_lea.sflag [#allocation6], 1
    %1031 = vsyncpa %s1030, 1

</llo_original>
